<compile_context>
chip_gen: v5e
topology: v5e:2x2
jax: 0.10.0
libtpu: 0.0.40
codegen_flags: <defaults>
</compile_context>

<pallas_src>
import functools

import jax
import jax.numpy as jnp
import numpy as np
from jax.experimental import pallas as pl
from jax.experimental.pallas import tpu as pltpu


def _captioning_rnn_kernel(feats_ref, wp_ref, bp_ref, x_ref, wx_ref, wh_ref,
                           b_ref, wout_ref, bout_ref, y_ref, loss_ref,
                           h_all_ref, *, t_in, bn, chunk_rows, ignore_index,
                           exp_in_bf16):
    """One batch tile: full RNN captioning forward + partial softmax loss.

    Refs (per tile):
      feats_ref : (BN, D_in)        bf16  image features
      wp_ref    : (D_in, H)         bf16  project_input weight
      bp_ref    : (1, H)            f32   project_input bias
      x_ref     : (1, T*BN, W)      bf16  embedded captions, time-major rows
      wx_ref    : (W, H)            bf16  RNN Wx
      wh_ref    : (H, H)            bf16  RNN Wh
      b_ref     : (1, H)            f32   RNN bias
      wout_ref  : (H, Vp)           bf16  project_output weight (lane-padded)
      bout_ref  : (1, Vp)           f32   project_output bias (pad = -1e30)
      y_ref     : (1, T*BN, 1)      i32   target word ids (time-major rows)
      loss_ref  : (1, 8, 128)       f32   lane-dense partial-loss output
      h_all_ref : (T*BN, H)         bf16  VMEM scratch for all hidden states
    """
    x = x_ref[0]                       # (T*BN, W) bf16
    y = y_ref[0]                       # (T*BN, 1) int32

    # h0 = project_input(image_features): bf16 operands, f32 MXU accumulate.
    h0 = (jnp.dot(feats_ref[...], wp_ref[...],
                  preferred_element_type=jnp.float32)
          + bp_ref[...]).astype(jnp.bfloat16)                    # (BN, H)

    # Hoisted input-to-hidden matmul for all timesteps at once (+ bias).
    # Stored bf16: halves the (T*BN, H) residency live across the recurrence.
    xw = (jnp.dot(x, wx_ref[...], preferred_element_type=jnp.float32)
          + b_ref[...]).astype(jnp.bfloat16)                     # (T*BN, H)

    wh = wh_ref[...]
    half = bn // 2
    h_a = h0[:half, :]
    h_b = h0[half:, :]
    # Serial recurrence: two independent half-tile chains interleaved so one
    # chain's MXU h@Wh overlaps the other's EUP tanh / VPU cast.  t_in is
    # small and static -> unrolled Python loop (LLO-scheduler friendly).
    for t in range(t_in):
        s0 = t * bn
        pre_a = (xw[s0:s0 + half, :].astype(jnp.float32)
                 + jnp.dot(h_a, wh, preferred_element_type=jnp.float32))
        pre_b = (xw[s0 + half:s0 + bn, :].astype(jnp.float32)
                 + jnp.dot(h_b, wh, preferred_element_type=jnp.float32))
        h_a = jnp.tanh(pre_a).astype(jnp.bfloat16)
        h_b = jnp.tanh(pre_b).astype(jnp.bfloat16)
        h_all_ref[s0:s0 + half, :] = h_a
        h_all_ref[s0 + half:s0 + bn, :] = h_b

    # Chunked output projection + temporal softmax CE: never hold more than
    # one (chunk_rows, Vp) f32 block of scores/iota/where temporaries.
    wout = wout_ref[...]
    bout = bout_ref[...]
    total_rows = t_in * bn
    total = jnp.float32(0.0)
    for c0 in range(0, total_rows, chunk_rows):
        rows = min(chunk_rows, total_rows - c0)
        s = (jnp.dot(h_all_ref[c0:c0 + rows, :], wout,
                     preferred_element_type=jnp.float32)
             + bout)                                             # (rows, Vp)
        yc = y[c0:c0 + rows, :]
        m = jnp.max(s, axis=-1, keepdims=True)                   # (rows, 1)
        d = s - m
        if exp_in_bf16:
            # v6e/v7x only: bf16 EUP exp (~2x throughput); f32 accumulation.
            p = jnp.exp(d.astype(jnp.bfloat16)).astype(jnp.float32)
        else:
            p = jnp.exp(d)
        lse = m + jnp.log(jnp.sum(p, axis=-1, keepdims=True))    # (rows, 1)
        # Target logit via iota compare + select + lane reduce (no one-hot).
        col = jax.lax.broadcasted_iota(jnp.int32, s.shape, 1)
        tgt = jnp.sum(jnp.where(col == yc, s, 0.0),
                      axis=-1, keepdims=True)                    # (rows, 1)
        per_elem = lse - tgt
        if ignore_index is not None:
            per_elem = jnp.where(yc == ignore_index, 0.0, per_elem)
        total = total + jnp.sum(per_elem)

    # Lane-dense partial-loss block; summed in the wrapper.
    loss_ref[...] = jnp.broadcast_to(total, loss_ref.shape)


def _invariant_spec(shape):
    """BlockSpec for a loop-invariant operand: constant index_map, single
    VMEM buffer (double-buffering a never-changing block is pure VMEM waste).
    Falls back to the default spec on jax versions without pipeline_mode."""
    idx = lambda i: (0,) * len(shape)
    try:
        return pl.BlockSpec(shape, idx, pipeline_mode=pl.Buffered(1))
    except TypeError:
        return pl.BlockSpec(shape, idx)


def _pick_vmem_limit_bytes():
    """~75% of physical VMEM, capped at 100 MiB.
    v7x (64 MiB/TC) -> 48 MiB; v5e/v6e (128 MiB) -> 96 MiB."""
    try:
        phys = pltpu.get_tpu_info().vmem_capacity_bytes
    except Exception:
        phys = 64 * 1024 * 1024      # conservative (v7x-safe) fallback
    return int(min(phys * 3 // 4, 100 * 1024 * 1024))


@functools.partial(jax.jit, static_argnames=("ignore_index", "batch_tile",
                                             "loss_chunk_rows", "exp_in_bf16"))
def captioning_rnn_forward(image_features, captions, params,
                           ignore_index=None, batch_tile=256,
                           loss_chunk_rows=512, exp_in_bf16=False):
    """JAX wrapper: embedding gather + layout glue; heavy math in the kernel.

    batch_tile: rows per grid step (multiple of 16).  At real batch sizes use
      256+ on v6e (fills the 256-wide MXU M dim) / 128+ on v5e; on v7x pick it
      so num_tiles is even (2 TensorCores) and weights + one scores chunk fit
      the 64 MiB VMEM.
    loss_chunk_rows: target rows per projection/loss chunk (rounded to a
      multiple of the batch tile, i.e. whole timesteps).
    """
    w_embed, w_proj, b_proj, wx, wh, b, w_out, b_out = params
    n, d_in = image_features.shape
    t_in = captions.shape[1] - 1
    wdim, hdim = wx.shape
    vocab = w_out.shape[1]

    bn = min(batch_tile, n)
    if n % bn != 0 or bn % 16 != 0:
        raise ValueError("batch must be divisible by batch_tile, and the tile "
                         "a multiple of 16 (two 8-row recurrence chains)")
    num_tiles = n // bn

    # Pad vocab to a lane multiple; padded logits get bias -1e30 so they never
    # win the max and contribute ~0 to the exp-sum (LSE stays exact).
    vocab_p = ((vocab + 127) // 128) * 128
    if vocab_p != vocab:
        w_out = jnp.pad(w_out, ((0, 0), (0, vocab_p - vocab)))
        b_out = jnp.pad(b_out, (0, vocab_p - vocab), constant_values=-1e30)

    # Permute the *small int32* caption ids into per-tile time-major order
    # first, then gather bf16 embeddings directly into the final layout
    # (no HBM->HBM transpose of the embedded activation slab).
    cap_in = captions[:, :-1]                                    # (N, T_in)
    cap_out = captions[:, 1:]
    cap_in_tiles = (cap_in.reshape(num_tiles, bn, t_in)
                    .transpose(0, 2, 1)
                    .reshape(num_tiles, t_in * bn))
    y_tiles = (cap_out.reshape(num_tiles, bn, t_in)
               .transpose(0, 2, 1)
               .reshape(num_tiles, t_in * bn, 1)
               .astype(jnp.int32))                               # (tiles,T*BN,1)
    x_tiles = w_embed.astype(jnp.bfloat16)[cap_in_tiles]         # (tiles,T*BN,W)

    feats_bf = image_features.astype(jnp.bfloat16)
    wp_bf = w_proj.astype(jnp.bfloat16)
    wx_bf = wx.astype(jnp.bfloat16)
    wh_bf = wh.astype(jnp.bfloat16)
    wout_bf = w_out.astype(jnp.bfloat16)
    bp2 = b_proj.reshape(1, hdim).astype(jnp.float32)
    b2 = b.reshape(1, hdim).astype(jnp.float32)
    bout2 = b_out.reshape(1, vocab_p).astype(jnp.float32)

    # Whole timesteps per loss chunk; last chunk may be ragged (still a
    # multiple of 16 rows since bn is).
    chunk_rows = max(bn, min(t_in * bn, (loss_chunk_rows // bn) * bn))

    kernel = functools.partial(_captioning_rnn_kernel, t_in=t_in, bn=bn,
                               chunk_rows=chunk_rows,
                               ignore_index=ignore_index,
                               exp_in_bf16=exp_in_bf16)

    grid_spec = pltpu.PrefetchScalarGridSpec(
        num_scalar_prefetch=0,
        grid=(num_tiles,),
        in_specs=[
            pl.BlockSpec((bn, d_in), lambda i: (i, 0)),                # feats
            _invariant_spec((d_in, hdim)),                             # W_proj
            _invariant_spec((1, hdim)),                                # b_proj
            pl.BlockSpec((1, t_in * bn, wdim), lambda i: (i, 0, 0)),   # x embed
            _invariant_spec((wdim, hdim)),                             # Wx
            _invariant_spec((hdim, hdim)),                             # Wh
            _invariant_spec((1, hdim)),                                # b
            _invariant_spec((hdim, vocab_p)),                          # W_out
            _invariant_spec((1, vocab_p)),                             # b_out
            pl.BlockSpec((1, t_in * bn, 1), lambda i: (i, 0, 0)),      # targets
        ],
        out_specs=pl.BlockSpec((1, 8, 128), lambda i: (i, 0, 0)),
        scratch_shapes=[pltpu.VMEM((t_in * bn, hdim), jnp.bfloat16)],
    )

    partial_losses = pl.pallas_call(
        kernel,
        out_shape=jax.ShapeDtypeStruct((num_tiles, 8, 128), jnp.float32),
        grid_spec=grid_spec,
        compiler_params=pltpu.CompilerParams(
            dimension_semantics=("parallel",),
            vmem_limit_bytes=_pick_vmem_limit_bytes()),
    )(feats_bf, wp_bf, bp2, x_tiles, wx_bf, wh_bf, b2, wout_bf, bout2, y_tiles)

    return jnp.sum(partial_losses[:, 0, 0]) / n


def _reference_forward(image_features, captions, params, ignore_index=None):
    """Pure-JAX f32 reference mirroring the PyTorch module (cell_type='rnn')."""
    w_embed, w_proj, b_proj, wx, wh, b, w_out, b_out = params
    captions_in = captions[:, :-1]
    captions_out = captions[:, 1:]
    x = w_embed[captions_in]
    h = image_features @ w_proj + b_proj
    n, t_in = captions_in.shape
    total = 0.0
    for t in range(t_in):
        h = jnp.tanh(x[:, t, :] @ wx + h @ wh + b)
        scores = h @ w_out + b_out
        logp = jax.nn.log_softmax(scores, axis=-1)
        nll = -logp[jnp.arange(n), captions_out[:, t]]
        if ignore_index is not None:
            nll = jnp.where(captions_out[:, t] == ignore_index, 0.0, nll)
        total = total + jnp.sum(nll)
    return total / n


def _init_params(key, vocab_size, input_dim, wordvec_dim, hidden_dim):
    """Deterministic parameter init matching the module's shapes (f32)."""
    ks = jax.random.split(key, 8)
    w_embed = (jax.random.normal(ks[0], (vocab_size, wordvec_dim), jnp.float32)
               / np.sqrt(vocab_size))
    # project_input (nn.Linear(input_dim, hidden_dim)) stored as (D_in, H).
    w_proj = (jax.random.normal(ks[1], (input_dim, hidden_dim), jnp.float32)
              / np.sqrt(input_dim))
    b_proj = jax.random.normal(ks[2], (hidden_dim,), jnp.float32) * 0.01
    # RNN params.
    wx = (jax.random.normal(ks[3], (wordvec_dim, hidden_dim), jnp.float32)
          / np.sqrt(wordvec_dim))
    wh = (jax.random.normal(ks[4], (hidden_dim, hidden_dim), jnp.float32)
          / np.sqrt(hidden_dim))
    b = jnp.zeros((hidden_dim,), jnp.float32)
    # project_output (nn.Linear(hidden_dim, vocab_size)) stored as (H, V).
    w_out = (jax.random.normal(ks[5], (hidden_dim, vocab_size), jnp.float32)
             / np.sqrt(hidden_dim))
    b_out = jax.random.normal(ks[6], (vocab_size,), jnp.float32) * 0.01
    return (w_embed, w_proj, b_proj, wx, wh, b, w_out, b_out)


if __name__ == "__main__":
    # Small but hardware-tile-friendly problem: batch multiple of 16, feature
    # dims multiples of 128 (lane), two batch tiles -> grid=(2,) (even tile
    # count, load-balances v7x's two TensorCores).
    N, T = 32, 8              # batch, caption length (T_in = 7)
    vocab_size = 256          # includes <NULL>=0, <START>=1, <END>=2
    input_dim = 128           # pooled image-feature dim (stand-in for 1280)
    wordvec_dim = 128
    hidden_dim = 128

    key = jax.random.PRNGKey(0)
    k_param, k_feat, k_cap = jax.random.split(key, 3)

    params = _init_params(k_param, vocab_size, input_dim, wordvec_dim,
                          hidden_dim)
    image_features = jax.random.normal(k_feat, (N, input_dim), jnp.float32)
    captions = jax.random.randint(k_cap, (N, T), 0, vocab_size,
                                  dtype=jnp.int32)

    # bf16 matmul operands in the kernel vs an all-f32 reference -> use a
    # bf16-appropriate tolerance.
    loss = captioning_rnn_forward(image_features, captions, params,
                                  batch_tile=16)
    loss = jax.block_until_ready(loss)
    ref = _reference_forward(image_features, captions, params)
    np.testing.assert_allclose(np.asarray(loss), np.asarray(ref),
                               rtol=2e-2, atol=2e-2)

    # ignore_index path + exercise the chunked projection/loss tail
    # (2-timestep chunks incl. a ragged final chunk).
    loss_ig = captioning_rnn_forward(image_features, captions, params,
                                     ignore_index=0, batch_tile=16,
                                     loss_chunk_rows=32)
    loss_ig = jax.block_until_ready(loss_ig)
    ref_ig = _reference_forward(image_features, captions, params,
                                ignore_index=0)
    np.testing.assert_allclose(np.asarray(loss_ig), np.asarray(ref_ig),
                               rtol=2e-2, atol=2e-2)

    print("KERNEL_OK")
</pallas_src>

<mosaic_0001>
module attributes {stable_mosaic.version = 11 : i64} {
  func.func @_captioning_rnn_kernel(%arg0: i32, %arg1: memref<16x128xbf16, #tpu.memory_space<vmem>>, %arg2: memref<128x128xbf16, #tpu.memory_space<vmem>>, %arg3: memref<1x128xf32, #tpu.memory_space<vmem>>, %arg4: memref<1x112x128xbf16, #tpu.memory_space<vmem>>, %arg5: memref<128x128xbf16, #tpu.memory_space<vmem>>, %arg6: memref<128x128xbf16, #tpu.memory_space<vmem>>, %arg7: memref<1x128xf32, #tpu.memory_space<vmem>>, %arg8: memref<128x256xbf16, #tpu.memory_space<vmem>>, %arg9: memref<1x256xf32, #tpu.memory_space<vmem>>, %arg10: memref<1x112x1xi32, #tpu.memory_space<vmem>>, %arg11: memref<1x8x128xf32, #tpu.memory_space<vmem>>, %arg12: memref<112x128xbf16, #tpu.memory_space<vmem>>) attributes {dimension_semantics = [#tpu.dimension_semantics<parallel>], iteration_bounds = array<i64: 2>, scalar_prefetch = 0 : i64, scratch_operands = 1 : i64, tpu.core_type = #tpu.core_type<tc>, window_params = [{transform_indices = @transform_0, window_bounds = array<i64: 16, 128>}, {pipeline_mode = #tpu.pipeline_mode<synchronous>, transform_indices = @transform_1, window_bounds = array<i64: 128, 128>}, {pipeline_mode = #tpu.pipeline_mode<synchronous>, transform_indices = @transform_2, window_bounds = array<i64: 1, 128>}, {transform_indices = @transform_3, window_bounds = array<i64: 1, 112, 128>}, {pipeline_mode = #tpu.pipeline_mode<synchronous>, transform_indices = @transform_4, window_bounds = array<i64: 128, 128>}, {pipeline_mode = #tpu.pipeline_mode<synchronous>, transform_indices = @transform_5, window_bounds = array<i64: 128, 128>}, {pipeline_mode = #tpu.pipeline_mode<synchronous>, transform_indices = @transform_6, window_bounds = array<i64: 1, 128>}, {pipeline_mode = #tpu.pipeline_mode<synchronous>, transform_indices = @transform_7, window_bounds = array<i64: 128, 256>}, {pipeline_mode = #tpu.pipeline_mode<synchronous>, transform_indices = @transform_8, window_bounds = array<i64: 1, 256>}, {transform_indices = @transform_9, window_bounds = array<i64: 1, 112, 1>}, {transform_indices = @transform_10, window_bounds = array<i64: 1, 8, 128>}]} {
    %c0 = arith.constant 0 : index
    %c0_0 = arith.constant 0 : index
    %c0_1 = arith.constant 0 : index
    %0 = vector.load %arg4[%c0, %c0_0, %c0_1] : memref<1x112x128xbf16, #tpu.memory_space<vmem>>, vector<1x112x128xbf16>
    %1 = vector.shape_cast %0 : vector<1x112x128xbf16> to vector<112x128xbf16>
    %c0_2 = arith.constant 0 : index
    %c0_3 = arith.constant 0 : index
    %c0_4 = arith.constant 0 : index
    %2 = vector.load %arg10[%c0_2, %c0_3, %c0_4] : memref<1x112x1xi32, #tpu.memory_space<vmem>>, vector<1x112x1xi32>
    %3 = vector.shape_cast %2 : vector<1x112x1xi32> to vector<112x1xi32>
    %c0_5 = arith.constant 0 : index
    %c0_6 = arith.constant 0 : index
    %4 = vector.load %arg1[%c0_5, %c0_6] : memref<16x128xbf16, #tpu.memory_space<vmem>>, vector<16x128xbf16>
    %c0_7 = arith.constant 0 : index
    %c0_8 = arith.constant 0 : index
    %5 = vector.load %arg2[%c0_7, %c0_8] : memref<128x128xbf16, #tpu.memory_space<vmem>>, vector<128x128xbf16>
    %cst = arith.constant dense<0.000000e+00> : vector<16x128xf32>
    %6 = tpu.matmul %4, %5, %cst {dimension_numbers = #tpu.dot_dimension_numbers<[1], [0], [0], [1], [0, 0, 1, 1], [], []>} : vector<16x128xbf16>, vector<128x128xbf16>, vector<16x128xf32> -> vector<16x128xf32>
    %c0_9 = arith.constant 0 : index
    %c0_10 = arith.constant 0 : index
    %7 = vector.load %arg3[%c0_9, %c0_10] : memref<1x128xf32, #tpu.memory_space<vmem>>, vector<1x128xf32>
    %8 = vector.broadcast %7 : vector<1x128xf32> to vector<16x128xf32>
    %9 = arith.addf %6, %8 : vector<16x128xf32>
    %10 = arith.truncf %9 : vector<16x128xf32> to vector<16x128xbf16>
    %c0_11 = arith.constant 0 : index
    %c0_12 = arith.constant 0 : index
    %11 = vector.load %arg5[%c0_11, %c0_12] : memref<128x128xbf16, #tpu.memory_space<vmem>>, vector<128x128xbf16>
    %cst_13 = arith.constant dense<0.000000e+00> : vector<112x128xf32>
    %12 = tpu.matmul %1, %11, %cst_13 {dimension_numbers = #tpu.dot_dimension_numbers<[1], [0], [0], [1], [0, 0, 1, 1], [], []>} : vector<112x128xbf16>, vector<128x128xbf16>, vector<112x128xf32> -> vector<112x128xf32>
    %c0_14 = arith.constant 0 : index
    %c0_15 = arith.constant 0 : index
    %13 = vector.load %arg7[%c0_14, %c0_15] : memref<1x128xf32, #tpu.memory_space<vmem>>, vector<1x128xf32>
    %14 = vector.broadcast %13 : vector<1x128xf32> to vector<112x128xf32>
    %15 = arith.addf %12, %14 : vector<112x128xf32>
    %16 = arith.truncf %15 : vector<112x128xf32> to vector<112x128xbf16>
    %c0_16 = arith.constant 0 : index
    %c0_17 = arith.constant 0 : index
    %17 = vector.load %arg6[%c0_16, %c0_17] : memref<128x128xbf16, #tpu.memory_space<vmem>>, vector<128x128xbf16>
    %18 = vector.extract_strided_slice %10 {offsets = [0, 0], sizes = [8, 128], strides = [1, 1]} : vector<16x128xbf16> to vector<8x128xbf16>
    %19 = vector.extract_strided_slice %10 {offsets = [8, 0], sizes = [8, 128], strides = [1, 1]} : vector<16x128xbf16> to vector<8x128xbf16>
    %20 = vector.extract_strided_slice %16 {offsets = [0, 0], sizes = [8, 128], strides = [1, 1]} : vector<112x128xbf16> to vector<8x128xbf16>
    %21 = arith.extf %20 : vector<8x128xbf16> to vector<8x128xf32>
    %cst_18 = arith.constant dense<0.000000e+00> : vector<8x128xf32>
    %22 = tpu.matmul %18, %17, %cst_18 {dimension_numbers = #tpu.dot_dimension_numbers<[1], [0], [0], [1], [0, 0, 1, 1], [], []>} : vector<8x128xbf16>, vector<128x128xbf16>, vector<8x128xf32> -> vector<8x128xf32>
    %23 = arith.addf %21, %22 : vector<8x128xf32>
    %24 = vector.extract_strided_slice %16 {offsets = [8, 0], sizes = [8, 128], strides = [1, 1]} : vector<112x128xbf16> to vector<8x128xbf16>
    %25 = arith.extf %24 : vector<8x128xbf16> to vector<8x128xf32>
    %cst_19 = arith.constant dense<0.000000e+00> : vector<8x128xf32>
    %26 = tpu.matmul %19, %17, %cst_19 {dimension_numbers = #tpu.dot_dimension_numbers<[1], [0], [0], [1], [0, 0, 1, 1], [], []>} : vector<8x128xbf16>, vector<128x128xbf16>, vector<8x128xf32> -> vector<8x128xf32>
    %27 = arith.addf %25, %26 : vector<8x128xf32>
    %28 = math.tanh %23 : vector<8x128xf32>
    %29 = arith.truncf %28 : vector<8x128xf32> to vector<8x128xbf16>
    %30 = math.tanh %27 : vector<8x128xf32>
    %31 = arith.truncf %30 : vector<8x128xf32> to vector<8x128xbf16>
    %c0_20 = arith.constant 0 : index
    %c0_21 = arith.constant 0 : index
    %32 = vector.load %arg12[%c0_20, %c0_21] : memref<112x128xbf16, #tpu.memory_space<vmem>>, vector<8x128xbf16>
    tpu.vector_store %arg12[%c0_20, %c0_21], %29 {strides = array<i32>} : memref<112x128xbf16, #tpu.memory_space<vmem>>, vector<8x128xbf16>,
    %c8 = arith.constant 8 : index
    %c0_22 = arith.constant 0 : index
    %33 = vector.load %arg12[%c8, %c0_22] : memref<112x128xbf16, #tpu.memory_space<vmem>>, vector<8x128xbf16>
    tpu.vector_store %arg12[%c8, %c0_22], %31 {strides = array<i32>} : memref<112x128xbf16, #tpu.memory_space<vmem>>, vector<8x128xbf16>,
    %34 = vector.extract_strided_slice %16 {offsets = [16, 0], sizes = [8, 128], strides = [1, 1]} : vector<112x128xbf16> to vector<8x128xbf16>
    %35 = arith.extf %34 : vector<8x128xbf16> to vector<8x128xf32>
    %cst_23 = arith.constant dense<0.000000e+00> : vector<8x128xf32>
    %36 = tpu.matmul %29, %17, %cst_23 {dimension_numbers = #tpu.dot_dimension_numbers<[1], [0], [0], [1], [0, 0, 1, 1], [], []>} : vector<8x128xbf16>, vector<128x128xbf16>, vector<8x128xf32> -> vector<8x128xf32>
    %37 = arith.addf %35, %36 : vector<8x128xf32>
    %38 = vector.extract_strided_slice %16 {offsets = [24, 0], sizes = [8, 128], strides = [1, 1]} : vector<112x128xbf16> to vector<8x128xbf16>
    %39 = arith.extf %38 : vector<8x128xbf16> to vector<8x128xf32>
    %cst_24 = arith.constant dense<0.000000e+00> : vector<8x128xf32>
    %40 = tpu.matmul %31, %17, %cst_24 {dimension_numbers = #tpu.dot_dimension_numbers<[1], [0], [0], [1], [0, 0, 1, 1], [], []>} : vector<8x128xbf16>, vector<128x128xbf16>, vector<8x128xf32> -> vector<8x128xf32>
    %41 = arith.addf %39, %40 : vector<8x128xf32>
    %42 = math.tanh %37 : vector<8x128xf32>
    %43 = arith.truncf %42 : vector<8x128xf32> to vector<8x128xbf16>
    %44 = math.tanh %41 : vector<8x128xf32>
    %45 = arith.truncf %44 : vector<8x128xf32> to vector<8x128xbf16>
    %c16 = arith.constant 16 : index
    %c0_25 = arith.constant 0 : index
    %46 = vector.load %arg12[%c16, %c0_25] : memref<112x128xbf16, #tpu.memory_space<vmem>>, vector<8x128xbf16>
    tpu.vector_store %arg12[%c16, %c0_25], %43 {strides = array<i32>} : memref<112x128xbf16, #tpu.memory_space<vmem>>, vector<8x128xbf16>,
    %c24 = arith.constant 24 : index
    %c0_26 = arith.constant 0 : index
    %47 = vector.load %arg12[%c24, %c0_26] : memref<112x128xbf16, #tpu.memory_space<vmem>>, vector<8x128xbf16>
    tpu.vector_store %arg12[%c24, %c0_26], %45 {strides = array<i32>} : memref<112x128xbf16, #tpu.memory_space<vmem>>, vector<8x128xbf16>,
    %48 = vector.extract_strided_slice %16 {offsets = [32, 0], sizes = [8, 128], strides = [1, 1]} : vector<112x128xbf16> to vector<8x128xbf16>
    %49 = arith.extf %48 : vector<8x128xbf16> to vector<8x128xf32>
    %cst_27 = arith.constant dense<0.000000e+00> : vector<8x128xf32>
    %50 = tpu.matmul %43, %17, %cst_27 {dimension_numbers = #tpu.dot_dimension_numbers<[1], [0], [0], [1], [0, 0, 1, 1], [], []>} : vector<8x128xbf16>, vector<128x128xbf16>, vector<8x128xf32> -> vector<8x128xf32>
    %51 = arith.addf %49, %50 : vector<8x128xf32>
    %52 = vector.extract_strided_slice %16 {offsets = [40, 0], sizes = [8, 128], strides = [1, 1]} : vector<112x128xbf16> to vector<8x128xbf16>
    %53 = arith.extf %52 : vector<8x128xbf16> to vector<8x128xf32>
    %cst_28 = arith.constant dense<0.000000e+00> : vector<8x128xf32>
    %54 = tpu.matmul %45, %17, %cst_28 {dimension_numbers = #tpu.dot_dimension_numbers<[1], [0], [0], [1], [0, 0, 1, 1], [], []>} : vector<8x128xbf16>, vector<128x128xbf16>, vector<8x128xf32> -> vector<8x128xf32>
    %55 = arith.addf %53, %54 : vector<8x128xf32>
    %56 = math.tanh %51 : vector<8x128xf32>
    %57 = arith.truncf %56 : vector<8x128xf32> to vector<8x128xbf16>
    %58 = math.tanh %55 : vector<8x128xf32>
    %59 = arith.truncf %58 : vector<8x128xf32> to vector<8x128xbf16>
    %c32 = arith.constant 32 : index
    %c0_29 = arith.constant 0 : index
    %60 = vector.load %arg12[%c32, %c0_29] : memref<112x128xbf16, #tpu.memory_space<vmem>>, vector<8x128xbf16>
    tpu.vector_store %arg12[%c32, %c0_29], %57 {strides = array<i32>} : memref<112x128xbf16, #tpu.memory_space<vmem>>, vector<8x128xbf16>,
    %c40 = arith.constant 40 : index
    %c0_30 = arith.constant 0 : index
    %61 = vector.load %arg12[%c40, %c0_30] : memref<112x128xbf16, #tpu.memory_space<vmem>>, vector<8x128xbf16>
    tpu.vector_store %arg12[%c40, %c0_30], %59 {strides = array<i32>} : memref<112x128xbf16, #tpu.memory_space<vmem>>, vector<8x128xbf16>,
    %62 = vector.extract_strided_slice %16 {offsets = [48, 0], sizes = [8, 128], strides = [1, 1]} : vector<112x128xbf16> to vector<8x128xbf16>
    %63 = arith.extf %62 : vector<8x128xbf16> to vector<8x128xf32>
    %cst_31 = arith.constant dense<0.000000e+00> : vector<8x128xf32>
    %64 = tpu.matmul %57, %17, %cst_31 {dimension_numbers = #tpu.dot_dimension_numbers<[1], [0], [0], [1], [0, 0, 1, 1], [], []>} : vector<8x128xbf16>, vector<128x128xbf16>, vector<8x128xf32> -> vector<8x128xf32>
    %65 = arith.addf %63, %64 : vector<8x128xf32>
    %66 = vector.extract_strided_slice %16 {offsets = [56, 0], sizes = [8, 128], strides = [1, 1]} : vector<112x128xbf16> to vector<8x128xbf16>
    %67 = arith.extf %66 : vector<8x128xbf16> to vector<8x128xf32>
    %cst_32 = arith.constant dense<0.000000e+00> : vector<8x128xf32>
    %68 = tpu.matmul %59, %17, %cst_32 {dimension_numbers = #tpu.dot_dimension_numbers<[1], [0], [0], [1], [0, 0, 1, 1], [], []>} : vector<8x128xbf16>, vector<128x128xbf16>, vector<8x128xf32> -> vector<8x128xf32>
    %69 = arith.addf %67, %68 : vector<8x128xf32>
    %70 = math.tanh %65 : vector<8x128xf32>
    %71 = arith.truncf %70 : vector<8x128xf32> to vector<8x128xbf16>
    %72 = math.tanh %69 : vector<8x128xf32>
    %73 = arith.truncf %72 : vector<8x128xf32> to vector<8x128xbf16>
    %c48 = arith.constant 48 : index
    %c0_33 = arith.constant 0 : index
    %74 = vector.load %arg12[%c48, %c0_33] : memref<112x128xbf16, #tpu.memory_space<vmem>>, vector<8x128xbf16>
    tpu.vector_store %arg12[%c48, %c0_33], %71 {strides = array<i32>} : memref<112x128xbf16, #tpu.memory_space<vmem>>, vector<8x128xbf16>,
    %c56 = arith.constant 56 : index
    %c0_34 = arith.constant 0 : index
    %75 = vector.load %arg12[%c56, %c0_34] : memref<112x128xbf16, #tpu.memory_space<vmem>>, vector<8x128xbf16>
    tpu.vector_store %arg12[%c56, %c0_34], %73 {strides = array<i32>} : memref<112x128xbf16, #tpu.memory_space<vmem>>, vector<8x128xbf16>,
    %76 = vector.extract_strided_slice %16 {offsets = [64, 0], sizes = [8, 128], strides = [1, 1]} : vector<112x128xbf16> to vector<8x128xbf16>
    %77 = arith.extf %76 : vector<8x128xbf16> to vector<8x128xf32>
    %cst_35 = arith.constant dense<0.000000e+00> : vector<8x128xf32>
    %78 = tpu.matmul %71, %17, %cst_35 {dimension_numbers = #tpu.dot_dimension_numbers<[1], [0], [0], [1], [0, 0, 1, 1], [], []>} : vector<8x128xbf16>, vector<128x128xbf16>, vector<8x128xf32> -> vector<8x128xf32>
    %79 = arith.addf %77, %78 : vector<8x128xf32>
    %80 = vector.extract_strided_slice %16 {offsets = [72, 0], sizes = [8, 128], strides = [1, 1]} : vector<112x128xbf16> to vector<8x128xbf16>
    %81 = arith.extf %80 : vector<8x128xbf16> to vector<8x128xf32>
    %cst_36 = arith.constant dense<0.000000e+00> : vector<8x128xf32>
    %82 = tpu.matmul %73, %17, %cst_36 {dimension_numbers = #tpu.dot_dimension_numbers<[1], [0], [0], [1], [0, 0, 1, 1], [], []>} : vector<8x128xbf16>, vector<128x128xbf16>, vector<8x128xf32> -> vector<8x128xf32>
    %83 = arith.addf %81, %82 : vector<8x128xf32>
    %84 = math.tanh %79 : vector<8x128xf32>
    %85 = arith.truncf %84 : vector<8x128xf32> to vector<8x128xbf16>
    %86 = math.tanh %83 : vector<8x128xf32>
    %87 = arith.truncf %86 : vector<8x128xf32> to vector<8x128xbf16>
    %c64 = arith.constant 64 : index
    %c0_37 = arith.constant 0 : index
    %88 = vector.load %arg12[%c64, %c0_37] : memref<112x128xbf16, #tpu.memory_space<vmem>>, vector<8x128xbf16>
    tpu.vector_store %arg12[%c64, %c0_37], %85 {strides = array<i32>} : memref<112x128xbf16, #tpu.memory_space<vmem>>, vector<8x128xbf16>,
    %c72 = arith.constant 72 : index
    %c0_38 = arith.constant 0 : index
    %89 = vector.load %arg12[%c72, %c0_38] : memref<112x128xbf16, #tpu.memory_space<vmem>>, vector<8x128xbf16>
    tpu.vector_store %arg12[%c72, %c0_38], %87 {strides = array<i32>} : memref<112x128xbf16, #tpu.memory_space<vmem>>, vector<8x128xbf16>,
    %90 = vector.extract_strided_slice %16 {offsets = [80, 0], sizes = [8, 128], strides = [1, 1]} : vector<112x128xbf16> to vector<8x128xbf16>
    %91 = arith.extf %90 : vector<8x128xbf16> to vector<8x128xf32>
    %cst_39 = arith.constant dense<0.000000e+00> : vector<8x128xf32>
    %92 = tpu.matmul %85, %17, %cst_39 {dimension_numbers = #tpu.dot_dimension_numbers<[1], [0], [0], [1], [0, 0, 1, 1], [], []>} : vector<8x128xbf16>, vector<128x128xbf16>, vector<8x128xf32> -> vector<8x128xf32>
    %93 = arith.addf %91, %92 : vector<8x128xf32>
    %94 = vector.extract_strided_slice %16 {offsets = [88, 0], sizes = [8, 128], strides = [1, 1]} : vector<112x128xbf16> to vector<8x128xbf16>
    %95 = arith.extf %94 : vector<8x128xbf16> to vector<8x128xf32>
    %cst_40 = arith.constant dense<0.000000e+00> : vector<8x128xf32>
    %96 = tpu.matmul %87, %17, %cst_40 {dimension_numbers = #tpu.dot_dimension_numbers<[1], [0], [0], [1], [0, 0, 1, 1], [], []>} : vector<8x128xbf16>, vector<128x128xbf16>, vector<8x128xf32> -> vector<8x128xf32>
    %97 = arith.addf %95, %96 : vector<8x128xf32>
    %98 = math.tanh %93 : vector<8x128xf32>
    %99 = arith.truncf %98 : vector<8x128xf32> to vector<8x128xbf16>
    %100 = math.tanh %97 : vector<8x128xf32>
    %101 = arith.truncf %100 : vector<8x128xf32> to vector<8x128xbf16>
    %c80 = arith.constant 80 : index
    %c0_41 = arith.constant 0 : index
    %102 = vector.load %arg12[%c80, %c0_41] : memref<112x128xbf16, #tpu.memory_space<vmem>>, vector<8x128xbf16>
    tpu.vector_store %arg12[%c80, %c0_41], %99 {strides = array<i32>} : memref<112x128xbf16, #tpu.memory_space<vmem>>, vector<8x128xbf16>,
    %c88 = arith.constant 88 : index
    %c0_42 = arith.constant 0 : index
    %103 = vector.load %arg12[%c88, %c0_42] : memref<112x128xbf16, #tpu.memory_space<vmem>>, vector<8x128xbf16>
    tpu.vector_store %arg12[%c88, %c0_42], %101 {strides = array<i32>} : memref<112x128xbf16, #tpu.memory_space<vmem>>, vector<8x128xbf16>,
    %104 = vector.extract_strided_slice %16 {offsets = [96, 0], sizes = [8, 128], strides = [1, 1]} : vector<112x128xbf16> to vector<8x128xbf16>
    %105 = arith.extf %104 : vector<8x128xbf16> to vector<8x128xf32>
    %cst_43 = arith.constant dense<0.000000e+00> : vector<8x128xf32>
    %106 = tpu.matmul %99, %17, %cst_43 {dimension_numbers = #tpu.dot_dimension_numbers<[1], [0], [0], [1], [0, 0, 1, 1], [], []>} : vector<8x128xbf16>, vector<128x128xbf16>, vector<8x128xf32> -> vector<8x128xf32>
    %107 = arith.addf %105, %106 : vector<8x128xf32>
    %108 = vector.extract_strided_slice %16 {offsets = [104, 0], sizes = [8, 128], strides = [1, 1]} : vector<112x128xbf16> to vector<8x128xbf16>
    %109 = arith.extf %108 : vector<8x128xbf16> to vector<8x128xf32>
    %cst_44 = arith.constant dense<0.000000e+00> : vector<8x128xf32>
    %110 = tpu.matmul %101, %17, %cst_44 {dimension_numbers = #tpu.dot_dimension_numbers<[1], [0], [0], [1], [0, 0, 1, 1], [], []>} : vector<8x128xbf16>, vector<128x128xbf16>, vector<8x128xf32> -> vector<8x128xf32>
    %111 = arith.addf %109, %110 : vector<8x128xf32>
    %112 = math.tanh %107 : vector<8x128xf32>
    %113 = arith.truncf %112 : vector<8x128xf32> to vector<8x128xbf16>
    %114 = math.tanh %111 : vector<8x128xf32>
    %115 = arith.truncf %114 : vector<8x128xf32> to vector<8x128xbf16>
    %c96 = arith.constant 96 : index
    %c0_45 = arith.constant 0 : index
    %116 = vector.load %arg12[%c96, %c0_45] : memref<112x128xbf16, #tpu.memory_space<vmem>>, vector<8x128xbf16>
    tpu.vector_store %arg12[%c96, %c0_45], %113 {strides = array<i32>} : memref<112x128xbf16, #tpu.memory_space<vmem>>, vector<8x128xbf16>,
    %c104 = arith.constant 104 : index
    %c0_46 = arith.constant 0 : index
    %117 = vector.load %arg12[%c104, %c0_46] : memref<112x128xbf16, #tpu.memory_space<vmem>>, vector<8x128xbf16>
    tpu.vector_store %arg12[%c104, %c0_46], %115 {strides = array<i32>} : memref<112x128xbf16, #tpu.memory_space<vmem>>, vector<8x128xbf16>,
    %c0_47 = arith.constant 0 : index
    %c0_48 = arith.constant 0 : index
    %118 = vector.load %arg8[%c0_47, %c0_48] : memref<128x256xbf16, #tpu.memory_space<vmem>>, vector<128x256xbf16>
    %c0_49 = arith.constant 0 : index
    %c0_50 = arith.constant 0 : index
    %119 = vector.load %arg9[%c0_49, %c0_50] : memref<1x256xf32, #tpu.memory_space<vmem>>, vector<1x256xf32>
    %c0_51 = arith.constant 0 : index
    %c0_52 = arith.constant 0 : index
    %120 = vector.load %arg12[%c0_51, %c0_52] : memref<112x128xbf16, #tpu.memory_space<vmem>>, vector<112x128xbf16>
    %cst_53 = arith.constant dense<0.000000e+00> : vector<112x256xf32>
    %121 = tpu.matmul %120, %118, %cst_53 {dimension_numbers = #tpu.dot_dimension_numbers<[1], [0], [0], [1], [0, 0, 1, 1], [], []>} : vector<112x128xbf16>, vector<128x256xbf16>, vector<112x256xf32> -> vector<112x256xf32>
    %122 = vector.broadcast %119 : vector<1x256xf32> to vector<112x256xf32>
    %123 = arith.addf %121, %122 : vector<112x256xf32>
    %cst_54 = arith.constant dense<0xFF800000> : vector<112xf32>
    %124 = vector.multi_reduction <maximumf>, %123, %cst_54 [1] : vector<112x256xf32> to vector<112xf32>
    %125 = vector.shape_cast %124 : vector<112xf32> to vector<112x1xf32>
    %126 = vector.broadcast %125 : vector<112x1xf32> to vector<112x256xf32>
    %127 = arith.subf %123, %126 : vector<112x256xf32>
    %128 = math.exp %127 : vector<112x256xf32>
    %cst_55 = arith.constant dense<0.000000e+00> : vector<112xf32>
    %129 = vector.multi_reduction <add>, %128, %cst_55 [1] : vector<112x256xf32> to vector<112xf32>
    %130 = vector.shape_cast %129 : vector<112xf32> to vector<112x1xf32>
    %131 = math.log %130 : vector<112x1xf32>
    %132 = arith.addf %125, %131 : vector<112x1xf32>
    %133 = tpu.iota {dimensions = array<i32: 1>} : vector<112x256xi32>
    %134 = vector.broadcast %3 : vector<112x1xi32> to vector<112x256xi32>
    %135 = arith.cmpi eq, %133, %134 : vector<112x256xi32>
    %cst_56 = arith.constant 0.000000e+00 : f32
    %136 = vector.broadcast %cst_56 : f32 to vector<112x256xf32>
    %137 = arith.select %135, %123, %136 : vector<112x256xi1>, vector<112x256xf32>
    %cst_57 = arith.constant dense<0.000000e+00> : vector<112xf32>
    %138 = vector.multi_reduction <add>, %137, %cst_57 [1] : vector<112x256xf32> to vector<112xf32>
    %139 = vector.shape_cast %138 : vector<112xf32> to vector<112x1xf32>
    %140 = arith.subf %132, %139 : vector<112x1xf32>
    %141 = vector.shape_cast %140 : vector<112x1xf32> to vector<1x112x1xf32>
    %cst_58 = arith.constant dense<0.000000e+00> : vector<1xf32>
    %142 = vector.multi_reduction <add>, %141, %cst_58 [1, 2] : vector<1x112x1xf32> to vector<1xf32>
    %143 = vector.shape_cast %142 : vector<1xf32> to vector<1x1x1xf32>
    %144 = vector.extract %143[0, 0, 0] : f32 from vector<1x1x1xf32>
    %cst_59 = arith.constant 0.000000e+00 : f32
    %145 = arith.addf %cst_59, %144 : f32
    %146 = vector.broadcast %145 : f32 to vector<1x8x128xf32>
    %c0_60 = arith.constant 0 : index
    %c0_61 = arith.constant 0 : index
    %c0_62 = arith.constant 0 : index
    %147 = vector.load %arg11[%c0_60, %c0_61, %c0_62] : memref<1x8x128xf32, #tpu.memory_space<vmem>>, vector<1x8x128xf32>
    tpu.vector_store %arg11[%c0_60, %c0_61, %c0_62], %146 {strides = array<i32>} : memref<1x8x128xf32, #tpu.memory_space<vmem>>, vector<1x8x128xf32>,
    return
  }
  func.func @transform_0(%arg0: i32) -> (i32, i32) {
    %c0_i32 = arith.constant 0 : i32
    %c0_i32_0 = arith.constant 0 : i32
    return %arg0, %c0_i32 : i32, i32
  }
  func.func @transform_1(%arg0: i32) -> (i32, i32) {
    %c0_i32 = arith.constant 0 : i32
    %c0_i32_0 = arith.constant 0 : i32
    %c0_i32_1 = arith.constant 0 : i32
    return %c0_i32, %c0_i32_0 : i32, i32
  }
  func.func @transform_2(%arg0: i32) -> (i32, i32) {
    %c0_i32 = arith.constant 0 : i32
    %c0_i32_0 = arith.constant 0 : i32
    %c0_i32_1 = arith.constant 0 : i32
    return %c0_i32, %c0_i32_0 : i32, i32
  }
  func.func @transform_3(%arg0: i32) -> (i32, i32, i32) {
    %c0_i32 = arith.constant 0 : i32
    %c0_i32_0 = arith.constant 0 : i32
    %c0_i32_1 = arith.constant 0 : i32
    return %arg0, %c0_i32, %c0_i32_0 : i32, i32, i32
  }
  func.func @transform_4(%arg0: i32) -> (i32, i32) {
    %c0_i32 = arith.constant 0 : i32
    %c0_i32_0 = arith.constant 0 : i32
    %c0_i32_1 = arith.constant 0 : i32
    return %c0_i32, %c0_i32_0 : i32, i32
  }
  func.func @transform_5(%arg0: i32) -> (i32, i32) {
    %c0_i32 = arith.constant 0 : i32
    %c0_i32_0 = arith.constant 0 : i32
    %c0_i32_1 = arith.constant 0 : i32
    return %c0_i32, %c0_i32_0 : i32, i32
  }
  func.func @transform_6(%arg0: i32) -> (i32, i32) {
    %c0_i32 = arith.constant 0 : i32
    %c0_i32_0 = arith.constant 0 : i32
    %c0_i32_1 = arith.constant 0 : i32
    return %c0_i32, %c0_i32_0 : i32, i32
  }
  func.func @transform_7(%arg0: i32) -> (i32, i32) {
    %c0_i32 = arith.constant 0 : i32
    %c0_i32_0 = arith.constant 0 : i32
    %c0_i32_1 = arith.constant 0 : i32
    return %c0_i32, %c0_i32_0 : i32, i32
  }
  func.func @transform_8(%arg0: i32) -> (i32, i32) {
    %c0_i32 = arith.constant 0 : i32
    %c0_i32_0 = arith.constant 0 : i32
    %c0_i32_1 = arith.constant 0 : i32
    return %c0_i32, %c0_i32_0 : i32, i32
  }
  func.func @transform_9(%arg0: i32) -> (i32, i32, i32) {
    %c0_i32 = arith.constant 0 : i32
    %c0_i32_0 = arith.constant 0 : i32
    %c0_i32_1 = arith.constant 0 : i32
    return %arg0, %c0_i32, %c0_i32_0 : i32, i32, i32
  }
  func.func @transform_10(%arg0: i32) -> (i32, i32, i32) {
    %c0_i32 = arith.constant 0 : i32
    %c0_i32_0 = arith.constant 0 : i32
    %c0_i32_1 = arith.constant 0 : i32
    return %arg0, %c0_i32, %c0_i32_0 : i32, i32, i32
  }
}

</mosaic_0001>

<llo_original>
// kernel: captioning_rnn_forward.1
$region0: #{captioning_rnn_forward.1}
  #allocation0 [shape = 'u32[]', space=smem, size = 0x4, offset = 0x4, fixed_abs, tag = 'smem constant byte address 0x4 - core index']
  #allocation1 [shape = 'u32[72,128]{1,0:T(1,128)}', space=vmem, size = 0x9000, scoped, tag = 'internal scratch']
  #allocation2 [shape = 'bf16[112,128]{1,0:T(8,128)(2,1)}', space=vmem, size = 0x7000, scoped, tag = 'scratch operand']
  %s0 = inlined_call_operand.vmem [shape: bf16[32,128], index: 0, kind: input, shape index: {}]
  %s1 = inlined_call_operand.vmem [shape: bf16[128,128], index: 1, kind: input, shape index: {}]
  %s2 = inlined_call_operand.vmem [shape: f32[1,128], index: 2, kind: input, shape index: {}]
  %s3 = inlined_call_operand.vmem [shape: bf16[2,112,128], index: 3, kind: input, shape index: {}]
  %s4 = inlined_call_operand.vmem [shape: bf16[128,128], index: 4, kind: input, shape index: {}]
  %s5 = inlined_call_operand.vmem [shape: bf16[128,128], index: 5, kind: input, shape index: {}]
  %s6 = inlined_call_operand.vmem [shape: f32[1,128], index: 6, kind: input, shape index: {}]
  %s7 = inlined_call_operand.vmem [shape: bf16[128,256], index: 7, kind: input, shape index: {}]
  %s8 = inlined_call_operand.vmem [shape: f32[1,256], index: 8, kind: input, shape index: {}]
  %s9 = inlined_call_operand.vmem [shape: s32[2,112,1], index: 9, kind: input, shape index: {}]
  %s10 = inlined_call_operand.vmem [shape: f32[2,8,128], index: 10, kind: output, shape index: {}]
  %s11 = sld [smem:[#allocation0]]
  $region73: #{captioning_rnn_forward.1} parent=0
    _
  %s13 = ssub.s32 1, %s11
  %s14 = scalar_select 0, %s13, %s11
  loop: start=0, step=1, limit=4
  $region2: #{captioning_rnn_forward.1} parent=0 // loop_pre_header
    _
  $region3: #{captioning_rnn_forward.1} parent=0 // loop_header
    %s16 = sphi 0, %s20
    %p17 = scmp.ge.s32.totalorder %s16, 4
    %s26 = sphi 0, %s28
    %s29 = sphi 0, %s26
    %s30 = sphi 0, %s29
    %s46 = sphi 0, %s30
    %s50 = sphi 0, %s50
    %s52 = sphi 0, %s50
    %s53 = sphi 0, %s52
    %s67 = sphi 0, %s53
    %s71 = sphi 0, %s71
    %s73 = sphi 0, %s71
    %s74 = sphi 0, %s73
    %s88 = sphi 0, %s74
    %s94 = sphi 0, %s96
    %s97 = sphi 0, %s94
    %s98 = sphi 0, %s97
    %s114 = sphi 0, %s98
    %s118 = sphi 0, %s118
    %s120 = sphi 0, %s118
    %s121 = sphi 0, %s120
    %s135 = sphi 0, %s121
    %s139 = sphi 0, %s139
    %s141 = sphi 0, %s139
    %s142 = sphi 0, %s141
    %s156 = sphi 0, %s142
    %s160 = sphi 0, %s160
    %s162 = sphi 0, %s160
    %s163 = sphi 0, %s162
    %s177 = sphi 0, %s163
    %s181 = sphi 0, %s181
    %s183 = sphi 0, %s181
    %s184 = sphi 0, %s183
    %s198 = sphi 0, %s184
    %s202 = sphi 0, %s202
    %s204 = sphi 0, %s202
    %s205 = sphi 0, %s204
    %s219 = sphi 0, %s205
    %s225 = sphi 0, %s227
    %s228 = sphi 0, %s225
    %s229 = sphi 0, %s228
    %s245 = sphi 0, %s229
    %s251 = sphi 0, %s253
    %s254 = sphi 0, %s251
    %s255 = sphi 0, %s254
    %s271 = sphi 0, %s255
  $region4: #{captioning_rnn_forward.1} parent=0 // loop_header_branch
    %19 = sbr.rel (%p17) target = $region8
  $region5: #{captioning_rnn_forward.1} parent=0 // loop_body
    %s21 = ssub.s32 %s16, 1
    %s22 = ssub.s32 %s16, 2
    %s23 = sadd.s32 %s16, 1
    %s24 = ssub.s32 %s16, %s23
    %p25 = scmp.eq.s32.totalorder %s24, 0
    %s27 = sadd.s32 %s26, 1
    %s28 = scalar_select %p25, %s26, %s27
    %p31 = pneg %p25
    %p32 = scmp.eq.s32.totalorder %s16, 1
    %p33 = por %p31, %p32
    %p34 = scmp.ne.s32.totalorder %s26, %s29
    %p35 = scmp.eq.s32.totalorder %s16, 0
    %p36 = por %p34, %p35
    %p37 = scmp.ne.s32.totalorder %s26, %s29
    %p38 = scmp.eq.s32.totalorder %s21, 1
    %p39 = por %p37, %p38
    %p40 = scmp.ne.s32.totalorder %s29, %s30
    %p41 = scmp.eq.s32.totalorder %s21, 0
    %p42 = por %p40, %p41
    %p43 = scmp.ne.s32.totalorder %s29, %s30
    %p44 = scmp.eq.s32.totalorder %s22, 1
    %p45 = por %p43, %p44
    %p47 = scmp.ne.s32.totalorder %s30, %s46
    %p48 = scmp.eq.s32.totalorder %s22, 0
    %p49 = por %p47, %p48
    %s51 = sadd.s32 %s50, 1
    %p54 = scmp.eq.s32.totalorder %s16, 1
    %p55 = scmp.ne.s32.totalorder %s50, %s52
    %p56 = scmp.eq.s32.totalorder %s16, 0
    %p57 = por %p55, %p56
    %p58 = scmp.ne.s32.totalorder %s50, %s52
    %p59 = scmp.eq.s32.totalorder %s21, 1
    %p60 = por %p58, %p59
    %p61 = scmp.ne.s32.totalorder %s52, %s53
    %p62 = scmp.eq.s32.totalorder %s21, 0
    %p63 = por %p61, %p62
    %p64 = scmp.ne.s32.totalorder %s52, %s53
    %p65 = scmp.eq.s32.totalorder %s22, 1
    %p66 = por %p64, %p65
    %p68 = scmp.ne.s32.totalorder %s53, %s67
    %p69 = scmp.eq.s32.totalorder %s22, 0
    %p70 = por %p68, %p69
    %s72 = sadd.s32 %s71, 1
    %p75 = scmp.eq.s32.totalorder %s16, 1
    %p76 = scmp.ne.s32.totalorder %s71, %s73
    %p77 = scmp.eq.s32.totalorder %s16, 0
    %p78 = por %p76, %p77
    %p79 = scmp.ne.s32.totalorder %s71, %s73
    %p80 = scmp.eq.s32.totalorder %s21, 1
    %p81 = por %p79, %p80
    %p82 = scmp.ne.s32.totalorder %s73, %s74
    %p83 = scmp.eq.s32.totalorder %s21, 0
    %p84 = por %p82, %p83
    %p85 = scmp.ne.s32.totalorder %s73, %s74
    %p86 = scmp.eq.s32.totalorder %s22, 1
    %p87 = por %p85, %p86
    %p89 = scmp.ne.s32.totalorder %s74, %s88
    %p90 = scmp.eq.s32.totalorder %s22, 0
    %p91 = por %p89, %p90
    %s92 = ssub.s32 %s16, %s23
    %p93 = scmp.eq.s32.totalorder %s92, 0
    %s95 = sadd.s32 %s94, 1
    %s96 = scalar_select %p93, %s94, %s95
    %p99 = pneg %p93
    %p100 = scmp.eq.s32.totalorder %s16, 1
    %p101 = por %p99, %p100
    %p102 = scmp.ne.s32.totalorder %s94, %s97
    %p103 = scmp.eq.s32.totalorder %s16, 0
    %p104 = por %p102, %p103
    %p105 = scmp.ne.s32.totalorder %s94, %s97
    %p106 = scmp.eq.s32.totalorder %s21, 1
    %p107 = por %p105, %p106
    %p108 = scmp.ne.s32.totalorder %s97, %s98
    %p109 = scmp.eq.s32.totalorder %s21, 0
    %p110 = por %p108, %p109
    %p111 = scmp.ne.s32.totalorder %s97, %s98
    %p112 = scmp.eq.s32.totalorder %s22, 1
    %p113 = por %p111, %p112
    %p115 = scmp.ne.s32.totalorder %s98, %s114
    %p116 = scmp.eq.s32.totalorder %s22, 0
    %p117 = por %p115, %p116
    %s119 = sadd.s32 %s118, 1
    %p122 = scmp.eq.s32.totalorder %s16, 1
    %p123 = scmp.ne.s32.totalorder %s118, %s120
    %p124 = scmp.eq.s32.totalorder %s16, 0
    %p125 = por %p123, %p124
    %p126 = scmp.ne.s32.totalorder %s118, %s120
    %p127 = scmp.eq.s32.totalorder %s21, 1
    %p128 = por %p126, %p127
    %p129 = scmp.ne.s32.totalorder %s120, %s121
    %p130 = scmp.eq.s32.totalorder %s21, 0
    %p131 = por %p129, %p130
    %p132 = scmp.ne.s32.totalorder %s120, %s121
    %p133 = scmp.eq.s32.totalorder %s22, 1
    %p134 = por %p132, %p133
    %p136 = scmp.ne.s32.totalorder %s121, %s135
    %p137 = scmp.eq.s32.totalorder %s22, 0
    %p138 = por %p136, %p137
    %s140 = sadd.s32 %s139, 1
    %p143 = scmp.eq.s32.totalorder %s16, 1
    %p144 = scmp.ne.s32.totalorder %s139, %s141
    %p145 = scmp.eq.s32.totalorder %s16, 0
    %p146 = por %p144, %p145
    %p147 = scmp.ne.s32.totalorder %s139, %s141
    %p148 = scmp.eq.s32.totalorder %s21, 1
    %p149 = por %p147, %p148
    %p150 = scmp.ne.s32.totalorder %s141, %s142
    %p151 = scmp.eq.s32.totalorder %s21, 0
    %p152 = por %p150, %p151
    %p153 = scmp.ne.s32.totalorder %s141, %s142
    %p154 = scmp.eq.s32.totalorder %s22, 1
    %p155 = por %p153, %p154
    %p157 = scmp.ne.s32.totalorder %s142, %s156
    %p158 = scmp.eq.s32.totalorder %s22, 0
    %p159 = por %p157, %p158
    %s161 = sadd.s32 %s160, 1
    %p164 = scmp.eq.s32.totalorder %s16, 1
    %p165 = scmp.ne.s32.totalorder %s160, %s162
    %p166 = scmp.eq.s32.totalorder %s16, 0
    %p167 = por %p165, %p166
    %p168 = scmp.ne.s32.totalorder %s160, %s162
    %p169 = scmp.eq.s32.totalorder %s21, 1
    %p170 = por %p168, %p169
    %p171 = scmp.ne.s32.totalorder %s162, %s163
    %p172 = scmp.eq.s32.totalorder %s21, 0
    %p173 = por %p171, %p172
    %p174 = scmp.ne.s32.totalorder %s162, %s163
    %p175 = scmp.eq.s32.totalorder %s22, 1
    %p176 = por %p174, %p175
    %p178 = scmp.ne.s32.totalorder %s163, %s177
    %p179 = scmp.eq.s32.totalorder %s22, 0
    %p180 = por %p178, %p179
    %s182 = sadd.s32 %s181, 1
    %p185 = scmp.eq.s32.totalorder %s16, 1
    %p186 = scmp.ne.s32.totalorder %s181, %s183
    %p187 = scmp.eq.s32.totalorder %s16, 0
    %p188 = por %p186, %p187
    %p189 = scmp.ne.s32.totalorder %s181, %s183
    %p190 = scmp.eq.s32.totalorder %s21, 1
    %p191 = por %p189, %p190
    %p192 = scmp.ne.s32.totalorder %s183, %s184
    %p193 = scmp.eq.s32.totalorder %s21, 0
    %p194 = por %p192, %p193
    %p195 = scmp.ne.s32.totalorder %s183, %s184
    %p196 = scmp.eq.s32.totalorder %s22, 1
    %p197 = por %p195, %p196
    %p199 = scmp.ne.s32.totalorder %s184, %s198
    %p200 = scmp.eq.s32.totalorder %s22, 0
    %p201 = por %p199, %p200
    %s203 = sadd.s32 %s202, 1
    %p206 = scmp.eq.s32.totalorder %s16, 1
    %p207 = scmp.ne.s32.totalorder %s202, %s204
    %p208 = scmp.eq.s32.totalorder %s16, 0
    %p209 = por %p207, %p208
    %p210 = scmp.ne.s32.totalorder %s202, %s204
    %p211 = scmp.eq.s32.totalorder %s21, 1
    %p212 = por %p210, %p211
    %p213 = scmp.ne.s32.totalorder %s204, %s205
    %p214 = scmp.eq.s32.totalorder %s21, 0
    %p215 = por %p213, %p214
    %p216 = scmp.ne.s32.totalorder %s204, %s205
    %p217 = scmp.eq.s32.totalorder %s22, 1
    %p218 = por %p216, %p217
    %p220 = scmp.ne.s32.totalorder %s205, %s219
    %p221 = scmp.eq.s32.totalorder %s22, 0
    %p222 = por %p220, %p221
    %s223 = ssub.s32 %s16, %s23
    %p224 = scmp.eq.s32.totalorder %s223, 0
    %s226 = sadd.s32 %s225, 1
    %s227 = scalar_select %p224, %s225, %s226
    %p230 = pneg %p224
    %p231 = scmp.eq.s32.totalorder %s16, 1
    %p232 = por %p230, %p231
    %p233 = scmp.ne.s32.totalorder %s225, %s228
    %p234 = scmp.eq.s32.totalorder %s16, 0
    %p235 = por %p233, %p234
    %p236 = scmp.ne.s32.totalorder %s225, %s228
    %p237 = scmp.eq.s32.totalorder %s21, 1
    %p238 = por %p236, %p237
    %p239 = scmp.ne.s32.totalorder %s228, %s229
    %p240 = scmp.eq.s32.totalorder %s21, 0
    %p241 = por %p239, %p240
    %p242 = scmp.ne.s32.totalorder %s228, %s229
    %p243 = scmp.eq.s32.totalorder %s22, 1
    %p244 = por %p242, %p243
    %p246 = scmp.ne.s32.totalorder %s229, %s245
    %p247 = scmp.eq.s32.totalorder %s22, 0
    %p248 = por %p246, %p247
    %s249 = ssub.s32 %s16, %s23
    %p250 = scmp.eq.s32.totalorder %s249, 0
    %s252 = sadd.s32 %s251, 1
    %s253 = scalar_select %p250, %s251, %s252
    %p256 = pneg %p250
    %p257 = scmp.eq.s32.totalorder %s16, 1
    %p258 = por %p256, %p257
    %p259 = scmp.ne.s32.totalorder %s251, %s254
    %p260 = scmp.eq.s32.totalorder %s16, 0
    %p261 = por %p259, %p260
    %p262 = scmp.ne.s32.totalorder %s251, %s254
    %p263 = scmp.eq.s32.totalorder %s21, 1
    %p264 = por %p262, %p263
    %p265 = scmp.ne.s32.totalorder %s254, %s255
    %p266 = scmp.eq.s32.totalorder %s21, 0
    %p267 = por %p265, %p266
    %p268 = scmp.ne.s32.totalorder %s254, %s255
    %p269 = scmp.eq.s32.totalorder %s22, 1
    %p270 = por %p268, %p269
    %p272 = scmp.ne.s32.totalorder %s255, %s271
    %p273 = scmp.eq.s32.totalorder %s22, 0
    %p274 = por %p272, %p273
    %p275 = scmp.le.s32.totalorder 1, %s16
    %p276 = scmp.lt.s32.totalorder %s16, 3
    %p277 = pnand %p275, %p276
    %p278 = pneg %p277
    // Predicated region
    $region9: #{captioning_rnn_forward.1} parent=5 // pred_check
      _
    $region10: #{captioning_rnn_forward.1} parent=5 // pred_check_branch
      %280 = sbr.rel (%p277) target = $region12
    $region11: #{captioning_rnn_forward.1} parent=5 // pred_region
      %s281 = ssub.s32 %s16, 1
      // Predicated region
      $region13: #{captioning_rnn_forward.1} parent=11 // pred_check
        %p282 = pneg %p63
      $region14: #{captioning_rnn_forward.1} parent=11 // pred_check_branch
        %284 = sbr.rel (%p282) target = $region16
      $region15: #{captioning_rnn_forward.1} parent=11 // pred_region
        _
      $region16: #{captioning_rnn_forward.1} parent=11 // pred_fallthru
        _
      // Predicated region
      $region17: #{captioning_rnn_forward.1} parent=11 // pred_check
        %p285 = pneg %p84
      $region18: #{captioning_rnn_forward.1} parent=11 // pred_check_branch
        %287 = sbr.rel (%p285) target = $region20
      $region19: #{captioning_rnn_forward.1} parent=11 // pred_region
        _
      $region20: #{captioning_rnn_forward.1} parent=11 // pred_fallthru
        _
      // Predicated region
      $region21: #{captioning_rnn_forward.1} parent=11 // pred_check
        %p288 = pneg %p131
      $region22: #{captioning_rnn_forward.1} parent=11 // pred_check_branch
        %290 = sbr.rel (%p288) target = $region24
      $region23: #{captioning_rnn_forward.1} parent=11 // pred_region
        _
      $region24: #{captioning_rnn_forward.1} parent=11 // pred_fallthru
        _
      // Predicated region
      $region25: #{captioning_rnn_forward.1} parent=11 // pred_check
        %p291 = pneg %p152
      $region26: #{captioning_rnn_forward.1} parent=11 // pred_check_branch
        %293 = sbr.rel (%p291) target = $region28
      $region27: #{captioning_rnn_forward.1} parent=11 // pred_region
        _
      $region28: #{captioning_rnn_forward.1} parent=11 // pred_fallthru
        _
      // Predicated region
      $region29: #{captioning_rnn_forward.1} parent=11 // pred_check
        %p294 = pneg %p173
      $region30: #{captioning_rnn_forward.1} parent=11 // pred_check_branch
        %296 = sbr.rel (%p294) target = $region32
      $region31: #{captioning_rnn_forward.1} parent=11 // pred_region
        _
      $region32: #{captioning_rnn_forward.1} parent=11 // pred_fallthru
        _
      // Predicated region
      $region33: #{captioning_rnn_forward.1} parent=11 // pred_check
        %p297 = pneg %p194
      $region34: #{captioning_rnn_forward.1} parent=11 // pred_check_branch
        %299 = sbr.rel (%p297) target = $region36
      $region35: #{captioning_rnn_forward.1} parent=11 // pred_region
        _
      $region36: #{captioning_rnn_forward.1} parent=11 // pred_fallthru
        _
      // Predicated region
      $region37: #{captioning_rnn_forward.1} parent=11 // pred_check
        %p300 = pneg %p215
      $region38: #{captioning_rnn_forward.1} parent=11 // pred_check_branch
        %302 = sbr.rel (%p300) target = $region40
      $region39: #{captioning_rnn_forward.1} parent=11 // pred_region
        _
      $region40: #{captioning_rnn_forward.1} parent=11 // pred_fallthru
        _
    $region12: #{captioning_rnn_forward.1} parent=5 // pred_fallthru
      _
    %p303 = scmp.lt.s32.totalorder %s16, 2
    // Predicated region
    $region41: #{captioning_rnn_forward.1} parent=5 // pred_check
      %p304 = pneg %p303
    $region42: #{captioning_rnn_forward.1} parent=5 // pred_check_branch
      %306 = sbr.rel (%p304) target = $region44
    $region43: #{captioning_rnn_forward.1} parent=5 // pred_region
      // Predicated region
      $region45: #{captioning_rnn_forward.1} parent=43 // pred_check
        %p307 = pneg %p36
      $region46: #{captioning_rnn_forward.1} parent=43 // pred_check_branch
        %309 = sbr.rel (%p307) target = $region48
      $region47: #{captioning_rnn_forward.1} parent=43 // pred_region
        %s310 = smul.u32 2, %s16
        %p311 = scmp.lt.s32.totalorder %s310, 3
        %s312 = scalar_select %p311, %s310, 3
        %s313 = smul.addr %s312, 4
        %s314 = scalar_lea.vmem %s0, %s313
        %s315 = smul.u32 2, %s16
      $region48: #{captioning_rnn_forward.1} parent=43 // pred_fallthru
        _
      // Predicated region
      $region49: #{captioning_rnn_forward.1} parent=43 // pred_check
        %p316 = pneg %p104
      $region50: #{captioning_rnn_forward.1} parent=43 // pred_check_branch
        %318 = sbr.rel (%p316) target = $region52
      $region51: #{captioning_rnn_forward.1} parent=43 // pred_region
        %p319 = scmp.lt.s32.totalorder %s16, 1
        %s320 = scalar_select %p319, %s16, 1
        %s321 = smul.addr %s320, 14
        %s322 = smul.addr %s321, 4
        %s323 = scalar_lea.vmem %s3, %s322
      $region52: #{captioning_rnn_forward.1} parent=43 // pred_fallthru
        _
      // Predicated region
      $region53: #{captioning_rnn_forward.1} parent=43 // pred_check
        %p324 = pneg %p235
      $region54: #{captioning_rnn_forward.1} parent=43 // pred_check_branch
        %326 = sbr.rel (%p324) target = $region56
      $region55: #{captioning_rnn_forward.1} parent=43 // pred_region
        %p327 = scmp.lt.s32.totalorder %s16, 1
        %s328 = scalar_select %p327, %s16, 1
        %s329 = smul.addr %s328, 14
        %s330 = smul.addr %s329, 8
        %s331 = scalar_lea.vmem %s9, %s330
      $region56: #{captioning_rnn_forward.1} parent=43 // pred_fallthru
        _
    $region44: #{captioning_rnn_forward.1} parent=5 // pred_fallthru
      _
    %p332 = scmp.le.s32.totalorder 1, %s16
    %p333 = scmp.lt.s32.totalorder %s16, 3
    %p334 = pnand %p332, %p333
    %p335 = pneg %p334
    // Predicated region
    $region57: #{captioning_rnn_forward.1} parent=5 // pred_check
      _
    $region58: #{captioning_rnn_forward.1} parent=5 // pred_check_branch
      %337 = sbr.rel (%p334) target = $region60
    $region59: #{captioning_rnn_forward.1} parent=5 // pred_region
      %s338 = ssub.s32 %s16, 1
      %s339 = smul.u32 2, %s21
      %p340 = scmp.lt.s32.totalorder %s339, 3
      %s341 = scalar_select %p340, %s339, 3
      %s342 = smul.addr %s341, 4
      %s343 = scalar_lea.vmem %s0, %s342
      %p344 = pneg %p42
      %p345 = pneg %p39
      %p346 = pneg %p63
      %p347 = pneg %p60
      %p348 = pneg %p84
      %p349 = pneg %p81
      %p350 = scmp.lt.s32.totalorder %s21, 1
      %s351 = scalar_select %p350, %s21, 1
      %s352 = smul.addr %s351, 14
      %s353 = smul.addr %s352, 4
      %s354 = scalar_lea.vmem %s3, %s353
      %p355 = pneg %p110
      %p356 = pneg %p107
      %p357 = pneg %p131
      %p358 = pneg %p128
      %p359 = pneg %p152
      %p360 = pneg %p149
      %p361 = pneg %p173
      %p362 = pneg %p170
      %p363 = pneg %p194
      %p364 = pneg %p191
      %p365 = pneg %p215
      %p366 = pneg %p212
      %p367 = scmp.lt.s32.totalorder %s21, 1
      %s368 = scalar_select %p367, %s21, 1
      %s369 = smul.addr %s368, 14
      %s370 = smul.addr %s369, 8
      %s371 = scalar_lea.vmem %s9, %s370
      %p372 = pneg %p241
      %p373 = pneg %p238
      %p374 = pneg %p267
      %p375 = pneg %p264
      %p376 = scmp.lt.s32.totalorder %s21, 1
      %s377 = scalar_select %p376, %s21, 1
      %s378 = smul.addr %s377, 8
      %s379 = scalar_lea.vmem %s10, %s378
      %s380 = smul.u32 2, %s21
      %p381 = scmp.lt.s32.totalorder %s380, 3
      %s382 = scalar_select %p381, %s380, 3
      %s383 = smul.addr %s382, 4
      %s384 = scalar_lea.vmem %s0, %s383
      %s385 = smul.u32 2, %s21
      %p386 = scmp.lt.s32.totalorder %s21, 1
      %s387 = scalar_select %p386, %s21, 1
      %s388 = smul.addr %s387, 14
      %s389 = smul.addr %s388, 4
      %s390 = scalar_lea.vmem %s3, %s389
      %p391 = scmp.lt.s32.totalorder %s21, 1
      %s392 = scalar_select %p391, %s21, 1
      %s393 = smul.addr %s392, 14
      %s394 = smul.addr %s393, 8
      %s395 = scalar_lea.vmem %s9, %s394
      %p396 = scmp.lt.s32.totalorder %s21, 1
      %s397 = scalar_select %p396, %s21, 1
      %s398 = smul.addr %s397, 8
      %s399 = scalar_lea.vmem %s10, %s398
      %v400 = vld [vmem:[%s390] sm:$0xf]
      %v401 = vld [vmem:[%s390 + $0x4] sm:$0xf]
      %v402 = vld [vmem:[%s390 + $0x8] sm:$0xf]
      %v403 = vld [vmem:[%s390 + $0xc] sm:$0xf]
      %v404 = vld [vmem:[%s390 + $0x10] sm:$0xf]
      %v405 = vld [vmem:[%s390 + $0x14] sm:$0xf]
      %v406 = vld [vmem:[%s390 + $0x18] sm:$0xf]
      %v407 = vld [vmem:[%s390 + $0x1c] sm:$0xf]
      %v408 = vld [vmem:[%s390 + $0x20] sm:$0xf]
      %v409 = vld [vmem:[%s390 + $0x24] sm:$0xf]
      %v410 = vld [vmem:[%s390 + $0x28] sm:$0xf]
      %v411 = vld [vmem:[%s390 + $0x2c] sm:$0xf]
      %v412 = vld [vmem:[%s390 + $0x30] sm:$0xf]
      %v413 = vld [vmem:[%s390 + $0x34] sm:$0xf]
      %v414 = vld [vmem:[%s395] sm:$0xff]
      %v415 = vld [vmem:[%s395 + $0x8] sm:$0xff]
      %v416 = vld [vmem:[%s395 + $0x10] sm:$0xff]
      %v417 = vld [vmem:[%s395 + $0x18] sm:$0xff]
      %v418 = vld [vmem:[%s395 + $0x20] sm:$0xff]
      %v419 = vld [vmem:[%s395 + $0x28] sm:$0xff]
      %v420 = vld [vmem:[%s395 + $0x30] sm:$0xff]
      %v421 = vld [vmem:[%s395 + $0x38] sm:$0xff]
      %v422 = vld [vmem:[%s395 + $0x40] sm:$0xff]
      %v423 = vld [vmem:[%s395 + $0x48] sm:$0xff]
      %v424 = vld [vmem:[%s395 + $0x50] sm:$0xff]
      %v425 = vld [vmem:[%s395 + $0x58] sm:$0xff]
      %v426 = vld [vmem:[%s395 + $0x60] sm:$0xff]
      %v427 = vld [vmem:[%s395 + $0x68] sm:$0xff]
      %v428 = vld [vmem:[%s384] sm:$0xf]
      %v429 = vld [vmem:[%s384 + $0x4] sm:$0xf]
      %v430 = vld [vmem:[%s1] sm:$0xf]
      %v431 = vld [vmem:[%s1 + $0x4] sm:$0xf]
      %v432 = vld [vmem:[%s1 + $0x8] sm:$0xf]
      %v433 = vld [vmem:[%s1 + $0xc] sm:$0xf]
      %v434 = vld [vmem:[%s1 + $0x10] sm:$0xf]
      %v435 = vld [vmem:[%s1 + $0x14] sm:$0xf]
      %v436 = vld [vmem:[%s1 + $0x18] sm:$0xf]
      %v437 = vld [vmem:[%s1 + $0x1c] sm:$0xf]
      %v438 = vld [vmem:[%s1 + $0x20] sm:$0xf]
      %v439 = vld [vmem:[%s1 + $0x24] sm:$0xf]
      %v440 = vld [vmem:[%s1 + $0x28] sm:$0xf]
      %v441 = vld [vmem:[%s1 + $0x2c] sm:$0xf]
      %v442 = vld [vmem:[%s1 + $0x30] sm:$0xf]
      %v443 = vld [vmem:[%s1 + $0x34] sm:$0xf]
      %v444 = vld [vmem:[%s1 + $0x38] sm:$0xf]
      %v445 = vld [vmem:[%s1 + $0x3c] sm:$0xf]
      %v446 = vld [vmem:[%s2] sm:$0x1]
      %v448 = vperm.slane %v446, 0
      %v452 = vunpack.c.l.b16 %v428
      %v453 = vunpack.c.l.b16 %v429
      %v454 = vpack.c.b16 %v453, %v452
      %v472 = vunpack.c.l.b16 %v430
      %v473 = vunpack.c.l.b16 %v431
      %v474 = vunpack.c.l.b16 %v432
      %v475 = vunpack.c.l.b16 %v433
      %v476 = vunpack.c.l.b16 %v434
      %v477 = vunpack.c.l.b16 %v435
      %v478 = vunpack.c.l.b16 %v436
      %v479 = vunpack.c.l.b16 %v437
      %v480 = vunpack.c.l.b16 %v438
      %v481 = vunpack.c.l.b16 %v439
      %v482 = vunpack.c.l.b16 %v440
      %v483 = vunpack.c.l.b16 %v441
      %v484 = vunpack.c.l.b16 %v442
      %v485 = vunpack.c.l.b16 %v443
      %v486 = vunpack.c.l.b16 %v444
      %v487 = vunpack.c.l.b16 %v445
      %v488 = vpack.c.b16 %v473, %v472
      %v489 = vpack.c.b16 %v475, %v474
      %v490 = vpack.c.b16 %v477, %v476
      %v491 = vpack.c.b16 %v479, %v478
      %v492 = vpack.c.b16 %v481, %v480
      %v493 = vpack.c.b16 %v483, %v482
      %v494 = vpack.c.b16 %v485, %v484
      %v495 = vpack.c.b16 %v487, %v486
      %504 = vmatpush.bf16.msra.mxu0 %v495
      %505 = vmatpush.bf16.msra.mxu0 %v494
      %506 = vmatpush.bf16.msra.mxu0 %v493
      %507 = vmatpush.bf16.msra.mxu0 %v492
      %508 = vmatpush.bf16.msra.mxu0 %v491
      %509 = vmatpush.bf16.msra.mxu0 %v490
      %510 = vmatpush.bf16.msra.mxu0 %v489
      %511 = vmatpush.bf16.msra.mxu0 %v488
      %512 = vmatmul.bf16.gmra.mxu0 %v454
      %v513 = vpop.f32.mrf.mxu0
      %v514 = vadd.f32 %v448, %v513
      %v515 = vpop.f32.mrf.mxu0
      %v516 = vadd.f32 %v448, %v515
      %517 = vdwg.mxu0
      %v518 = vpack.c.bf16 %v514, %v514
      %v519 = vpack.c.bf16 %v516, %v516
      %v520 = vld [vmem:[%s4] sm:$0xf]
      %v521 = vld [vmem:[%s4 + $0x4] sm:$0xf]
      %v522 = vld [vmem:[%s4 + $0x8] sm:$0xf]
      %v523 = vld [vmem:[%s4 + $0xc] sm:$0xf]
      %v524 = vld [vmem:[%s4 + $0x10] sm:$0xf]
      %v525 = vld [vmem:[%s4 + $0x14] sm:$0xf]
      %v526 = vld [vmem:[%s4 + $0x18] sm:$0xf]
      %v527 = vld [vmem:[%s4 + $0x1c] sm:$0xf]
      %v528 = vld [vmem:[%s4 + $0x20] sm:$0xf]
      %v529 = vld [vmem:[%s4 + $0x24] sm:$0xf]
      %v530 = vld [vmem:[%s4 + $0x28] sm:$0xf]
      %v531 = vld [vmem:[%s4 + $0x2c] sm:$0xf]
      %v532 = vld [vmem:[%s4 + $0x30] sm:$0xf]
      %v533 = vld [vmem:[%s4 + $0x34] sm:$0xf]
      %v534 = vld [vmem:[%s4 + $0x38] sm:$0xf]
      %v535 = vld [vmem:[%s4 + $0x3c] sm:$0xf]
      %v536 = vld [vmem:[%s6] sm:$0x1]
      %v538 = vperm.slane %v536, 0
      %v554 = vunpack.c.l.b16 %v400
      %v555 = vunpack.c.l.b16 %v401
      %v556 = vunpack.c.l.b16 %v402
      %v557 = vunpack.c.l.b16 %v403
      %v558 = vunpack.c.l.b16 %v404
      %v559 = vunpack.c.l.b16 %v405
      %v560 = vunpack.c.l.b16 %v406
      %v561 = vunpack.c.l.b16 %v407
      %v562 = vunpack.c.l.b16 %v408
      %v563 = vunpack.c.l.b16 %v409
      %v564 = vunpack.c.l.b16 %v410
      %v565 = vunpack.c.l.b16 %v411
      %v566 = vunpack.c.l.b16 %v412
      %v567 = vunpack.c.l.b16 %v413
      %v568 = vpack.c.b16 %v555, %v554
      %v569 = vpack.c.b16 %v557, %v556
      %v570 = vpack.c.b16 %v559, %v558
      %v571 = vpack.c.b16 %v561, %v560
      %v572 = vpack.c.b16 %v563, %v562
      %v573 = vpack.c.b16 %v565, %v564
      %v574 = vpack.c.b16 %v567, %v566
      %v598 = vunpack.c.l.b16 %v520
      %v599 = vunpack.c.l.b16 %v521
      %v600 = vunpack.c.l.b16 %v522
      %v601 = vunpack.c.l.b16 %v523
      %v602 = vunpack.c.l.b16 %v524
      %v603 = vunpack.c.l.b16 %v525
      %v604 = vunpack.c.l.b16 %v526
      %v605 = vunpack.c.l.b16 %v527
      %v606 = vunpack.c.l.b16 %v528
      %v607 = vunpack.c.l.b16 %v529
      %v608 = vunpack.c.l.b16 %v530
      %v609 = vunpack.c.l.b16 %v531
      %v610 = vunpack.c.l.b16 %v532
      %v611 = vunpack.c.l.b16 %v533
      %v612 = vunpack.c.l.b16 %v534
      %v613 = vunpack.c.l.b16 %v535
      %v614 = vpack.c.b16 %v599, %v598
      %v615 = vpack.c.b16 %v601, %v600
      %v616 = vpack.c.b16 %v603, %v602
      %v617 = vpack.c.b16 %v605, %v604
      %v618 = vpack.c.b16 %v607, %v606
      %v619 = vpack.c.b16 %v609, %v608
      %v620 = vpack.c.b16 %v611, %v610
      %v621 = vpack.c.b16 %v613, %v612
      %630 = vmatpush.bf16.msra.mxu0 %v621
      %631 = vmatpush.bf16.msra.mxu0 %v620
      %632 = vmatpush.bf16.msra.mxu0 %v619
      %633 = vmatpush.bf16.msra.mxu0 %v618
      %634 = vmatpush.bf16.msra.mxu0 %v617
      %635 = vmatpush.bf16.msra.mxu0 %v616
      %636 = vmatpush.bf16.msra.mxu0 %v615
      %637 = vmatpush.bf16.msra.mxu0 %v614
      %638 = vmatmul.bf16.gmra.mxu0 %v568
      %v639 = vpop.f32.mrf.mxu0
      %v640 = vadd.f32 %v538, %v639
      %v641 = vpop.f32.mrf.mxu0
      %v642 = vadd.f32 %v538, %v641
      %643 = vmatmul.bf16.gmra.mxu0 %v569
      %v644 = vpop.f32.mrf.mxu0
      %v645 = vadd.f32 %v538, %v644
      %v646 = vpop.f32.mrf.mxu0
      %v647 = vadd.f32 %v538, %v646
      %648 = vmatmul.bf16.gmra.mxu0 %v570
      %v649 = vpop.f32.mrf.mxu0
      %v650 = vadd.f32 %v538, %v649
      %v651 = vpop.f32.mrf.mxu0
      %v652 = vadd.f32 %v538, %v651
      %653 = vmatmul.bf16.gmra.mxu0 %v571
      %v654 = vpop.f32.mrf.mxu0
      %v655 = vadd.f32 %v538, %v654
      %v656 = vpop.f32.mrf.mxu0
      %v657 = vadd.f32 %v538, %v656
      %658 = vmatmul.bf16.gmra.mxu0 %v572
      %v659 = vpop.f32.mrf.mxu0
      %v660 = vadd.f32 %v538, %v659
      %v661 = vpop.f32.mrf.mxu0
      %v662 = vadd.f32 %v538, %v661
      %663 = vmatmul.bf16.gmra.mxu0 %v573
      %v664 = vpop.f32.mrf.mxu0
      %v665 = vadd.f32 %v538, %v664
      %v666 = vpop.f32.mrf.mxu0
      %v667 = vadd.f32 %v538, %v666
      %668 = vmatmul.bf16.gmra.mxu0 %v574
      %v669 = vpop.f32.mrf.mxu0
      %v670 = vadd.f32 %v538, %v669
      %v671 = vpop.f32.mrf.mxu0
      %v672 = vadd.f32 %v538, %v671
      %673 = vdwg.mxu0
      %v674 = vpack.c.bf16 %v640, %v640
      %v675 = vpack.c.bf16 %v642, %v642
      %v676 = vpack.c.bf16 %v645, %v645
      %v677 = vpack.c.bf16 %v647, %v647
      %v678 = vpack.c.bf16 %v650, %v650
      %v679 = vpack.c.bf16 %v652, %v652
      %v680 = vpack.c.bf16 %v655, %v655
      %v681 = vpack.c.bf16 %v657, %v657
      %v682 = vpack.c.bf16 %v660, %v660
      %v683 = vpack.c.bf16 %v662, %v662
      %v684 = vpack.c.bf16 %v665, %v665
      %v685 = vpack.c.bf16 %v667, %v667
      %v686 = vpack.c.bf16 %v670, %v670
      %v687 = vpack.c.bf16 %v672, %v672
      %v688 = vld [vmem:[%s5] sm:$0xf]
      %v689 = vld [vmem:[%s5 + $0x4] sm:$0xf]
      %v690 = vld [vmem:[%s5 + $0x8] sm:$0xf]
      %v691 = vld [vmem:[%s5 + $0xc] sm:$0xf]
      %v692 = vld [vmem:[%s5 + $0x10] sm:$0xf]
      %v693 = vld [vmem:[%s5 + $0x14] sm:$0xf]
      %v694 = vld [vmem:[%s5 + $0x18] sm:$0xf]
      %v695 = vld [vmem:[%s5 + $0x1c] sm:$0xf]
      %v696 = vld [vmem:[%s5 + $0x20] sm:$0xf]
      %v697 = vld [vmem:[%s5 + $0x24] sm:$0xf]
      %v698 = vld [vmem:[%s5 + $0x28] sm:$0xf]
      %v699 = vld [vmem:[%s5 + $0x2c] sm:$0xf]
      %v700 = vld [vmem:[%s5 + $0x30] sm:$0xf]
      %v701 = vld [vmem:[%s5 + $0x34] sm:$0xf]
      %v702 = vld [vmem:[%s5 + $0x38] sm:$0xf]
      %v703 = vld [vmem:[%s5 + $0x3c] sm:$0xf]
      %v704 = vunpack.c.l.bf16 %v674
      %v721 = vunpack.c.l.b16 %v688
      %v722 = vunpack.c.l.b16 %v689
      %v723 = vunpack.c.l.b16 %v690
      %v724 = vunpack.c.l.b16 %v691
      %v725 = vunpack.c.l.b16 %v692
      %v726 = vunpack.c.l.b16 %v693
      %v727 = vunpack.c.l.b16 %v694
      %v728 = vunpack.c.l.b16 %v695
      %v729 = vunpack.c.l.b16 %v696
      %v730 = vunpack.c.l.b16 %v697
      %v731 = vunpack.c.l.b16 %v698
      %v732 = vunpack.c.l.b16 %v699
      %v733 = vunpack.c.l.b16 %v700
      %v734 = vunpack.c.l.b16 %v701
      %v735 = vunpack.c.l.b16 %v702
      %v736 = vunpack.c.l.b16 %v703
      %v737 = vpack.c.b16 %v722, %v721
      %v738 = vpack.c.b16 %v724, %v723
      %v739 = vpack.c.b16 %v726, %v725
      %v740 = vpack.c.b16 %v728, %v727
      %v741 = vpack.c.b16 %v730, %v729
      %v742 = vpack.c.b16 %v732, %v731
      %v743 = vpack.c.b16 %v734, %v733
      %v744 = vpack.c.b16 %v736, %v735
      %753 = vmatpush.bf16.msra.mxu0 %v744
      %754 = vmatpush.bf16.msra.mxu0 %v743
      %755 = vmatpush.bf16.msra.mxu0 %v742
      %756 = vmatpush.bf16.msra.mxu0 %v741
      %757 = vmatpush.bf16.msra.mxu0 %v740
      %758 = vmatpush.bf16.msra.mxu0 %v739
      %759 = vmatpush.bf16.msra.mxu0 %v738
      %760 = vmatpush.bf16.msra.mxu0 %v737
      %761 = vmatmul.bf16.gmra.mxu0 %v518
      %v762 = vpop.f32.mrf.mxu0
      %v763 = vadd.f32 0.0, %v762
      %v764 = vpop.f32.mrf.mxu0
      %765 = vdwg.mxu0
      %v766 = vadd.f32 %v704, %v763
      %v767 = vunpack.c.l.bf16 %v675
      %768 = vmatpush.bf16.msra.mxu0 %v744
      %769 = vmatpush.bf16.msra.mxu0 %v743
      %770 = vmatpush.bf16.msra.mxu0 %v742
      %771 = vmatpush.bf16.msra.mxu0 %v741
      %772 = vmatpush.bf16.msra.mxu0 %v740
      %773 = vmatpush.bf16.msra.mxu0 %v739
      %774 = vmatpush.bf16.msra.mxu0 %v738
      %775 = vmatpush.bf16.msra.mxu0 %v737
      %776 = vmatmul.bf16.gmra.mxu0 %v519
      %v777 = vpop.f32.mrf.mxu0
      %v778 = vadd.f32 0.0, %v777
      %v779 = vpop.f32.mrf.mxu0
      %780 = vdwg.mxu0
      %v781 = vadd.f32 %v767, %v778
      %v782 = vtanh.pop %v766
      %v783 = vpack.c.bf16 %v782, %v782
      %v784 = vtanh.pop %v781
      %v785 = vpack.c.bf16 %v784, %v784
      %786 = vst [vmem:[#allocation2] sm:$0xf] %v783
      %787 = vst [vmem:[#allocation2 + $0x4] sm:$0xf] %v785
      %v788 = vunpack.c.l.bf16 %v676
      %789 = vmatpush.bf16.msra.mxu0 %v744
      %790 = vmatpush.bf16.msra.mxu0 %v743
      %791 = vmatpush.bf16.msra.mxu0 %v742
      %792 = vmatpush.bf16.msra.mxu0 %v741
      %793 = vmatpush.bf16.msra.mxu0 %v740
      %794 = vmatpush.bf16.msra.mxu0 %v739
      %795 = vmatpush.bf16.msra.mxu0 %v738
      %796 = vmatpush.bf16.msra.mxu0 %v737
      %797 = vmatmul.bf16.gmra.mxu0 %v783
      %v798 = vpop.f32.mrf.mxu0
      %v799 = vadd.f32 0.0, %v798
      %v800 = vpop.f32.mrf.mxu0
      %801 = vdwg.mxu0
      %v802 = vadd.f32 %v788, %v799
      %v803 = vunpack.c.l.bf16 %v677
      %804 = vmatpush.bf16.msra.mxu0 %v744
      %805 = vmatpush.bf16.msra.mxu0 %v743
      %806 = vmatpush.bf16.msra.mxu0 %v742
      %807 = vmatpush.bf16.msra.mxu0 %v741
      %808 = vmatpush.bf16.msra.mxu0 %v740
      %809 = vmatpush.bf16.msra.mxu0 %v739
      %810 = vmatpush.bf16.msra.mxu0 %v738
      %811 = vmatpush.bf16.msra.mxu0 %v737
      %812 = vmatmul.bf16.gmra.mxu0 %v785
      %v813 = vpop.f32.mrf.mxu0
      %v814 = vadd.f32 0.0, %v813
      %v815 = vpop.f32.mrf.mxu0
      %816 = vdwg.mxu0
      %v817 = vadd.f32 %v803, %v814
      %v818 = vtanh.pop %v802
      %v819 = vpack.c.bf16 %v818, %v818
      %v820 = vtanh.pop %v817
      %v821 = vpack.c.bf16 %v820, %v820
      %822 = vst [vmem:[#allocation2 + $0x8] sm:$0xf] %v819
      %823 = vst [vmem:[#allocation2 + $0xc] sm:$0xf] %v821
      %v824 = vunpack.c.l.bf16 %v678
      %825 = vmatpush.bf16.msra.mxu0 %v744
      %826 = vmatpush.bf16.msra.mxu0 %v743
      %827 = vmatpush.bf16.msra.mxu0 %v742
      %828 = vmatpush.bf16.msra.mxu0 %v741
      %829 = vmatpush.bf16.msra.mxu0 %v740
      %830 = vmatpush.bf16.msra.mxu0 %v739
      %831 = vmatpush.bf16.msra.mxu0 %v738
      %832 = vmatpush.bf16.msra.mxu0 %v737
      %833 = vmatmul.bf16.gmra.mxu0 %v819
      %v834 = vpop.f32.mrf.mxu0
      %v835 = vadd.f32 0.0, %v834
      %v836 = vpop.f32.mrf.mxu0
      %837 = vdwg.mxu0
      %v838 = vadd.f32 %v824, %v835
      %v839 = vunpack.c.l.bf16 %v679
      %840 = vmatpush.bf16.msra.mxu0 %v744
      %841 = vmatpush.bf16.msra.mxu0 %v743
      %842 = vmatpush.bf16.msra.mxu0 %v742
      %843 = vmatpush.bf16.msra.mxu0 %v741
      %844 = vmatpush.bf16.msra.mxu0 %v740
      %845 = vmatpush.bf16.msra.mxu0 %v739
      %846 = vmatpush.bf16.msra.mxu0 %v738
      %847 = vmatpush.bf16.msra.mxu0 %v737
      %848 = vmatmul.bf16.gmra.mxu0 %v821
      %v849 = vpop.f32.mrf.mxu0
      %v850 = vadd.f32 0.0, %v849
      %v851 = vpop.f32.mrf.mxu0
      %852 = vdwg.mxu0
      %v853 = vadd.f32 %v839, %v850
      %v854 = vtanh.pop %v838
      %v855 = vpack.c.bf16 %v854, %v854
      %v856 = vtanh.pop %v853
      %v857 = vpack.c.bf16 %v856, %v856
      %858 = vst [vmem:[#allocation2 + $0x10] sm:$0xf] %v855
      %859 = vst [vmem:[#allocation2 + $0x14] sm:$0xf] %v857
      %v860 = vunpack.c.l.bf16 %v680
      %861 = vmatpush.bf16.msra.mxu0 %v744
      %862 = vmatpush.bf16.msra.mxu0 %v743
      %863 = vmatpush.bf16.msra.mxu0 %v742
      %864 = vmatpush.bf16.msra.mxu0 %v741
      %865 = vmatpush.bf16.msra.mxu0 %v740
      %866 = vmatpush.bf16.msra.mxu0 %v739
      %867 = vmatpush.bf16.msra.mxu0 %v738
      %868 = vmatpush.bf16.msra.mxu0 %v737
      %869 = vmatmul.bf16.gmra.mxu0 %v855
      %v870 = vpop.f32.mrf.mxu0
      %v871 = vadd.f32 0.0, %v870
      %v872 = vpop.f32.mrf.mxu0
      %873 = vdwg.mxu0
      %v874 = vadd.f32 %v860, %v871
      %v875 = vunpack.c.l.bf16 %v681
      %876 = vmatpush.bf16.msra.mxu0 %v744
      %877 = vmatpush.bf16.msra.mxu0 %v743
      %878 = vmatpush.bf16.msra.mxu0 %v742
      %879 = vmatpush.bf16.msra.mxu0 %v741
      %880 = vmatpush.bf16.msra.mxu0 %v740
      %881 = vmatpush.bf16.msra.mxu0 %v739
      %882 = vmatpush.bf16.msra.mxu0 %v738
      %883 = vmatpush.bf16.msra.mxu0 %v737
      %884 = vmatmul.bf16.gmra.mxu0 %v857
      %v885 = vpop.f32.mrf.mxu0
      %v886 = vadd.f32 0.0, %v885
      %v887 = vpop.f32.mrf.mxu0
      %888 = vdwg.mxu0
      %v889 = vadd.f32 %v875, %v886
      %v890 = vtanh.pop %v874
      %v891 = vpack.c.bf16 %v890, %v890
      %v892 = vtanh.pop %v889
      %v893 = vpack.c.bf16 %v892, %v892
      %894 = vst [vmem:[#allocation2 + $0x18] sm:$0xf] %v891
      %895 = vst [vmem:[#allocation2 + $0x1c] sm:$0xf] %v893
      %v896 = vunpack.c.l.bf16 %v682
      %897 = vmatpush.bf16.msra.mxu0 %v744
      %898 = vmatpush.bf16.msra.mxu0 %v743
      %899 = vmatpush.bf16.msra.mxu0 %v742
      %900 = vmatpush.bf16.msra.mxu0 %v741
      %901 = vmatpush.bf16.msra.mxu0 %v740
      %902 = vmatpush.bf16.msra.mxu0 %v739
      %903 = vmatpush.bf16.msra.mxu0 %v738
      %904 = vmatpush.bf16.msra.mxu0 %v737
      %905 = vmatmul.bf16.gmra.mxu0 %v891
      %v906 = vpop.f32.mrf.mxu0
      %v907 = vadd.f32 0.0, %v906
      %v908 = vpop.f32.mrf.mxu0
      %909 = vdwg.mxu0
      %v910 = vadd.f32 %v896, %v907
      %v911 = vunpack.c.l.bf16 %v683
      %912 = vmatpush.bf16.msra.mxu0 %v744
      %913 = vmatpush.bf16.msra.mxu0 %v743
      %914 = vmatpush.bf16.msra.mxu0 %v742
      %915 = vmatpush.bf16.msra.mxu0 %v741
      %916 = vmatpush.bf16.msra.mxu0 %v740
      %917 = vmatpush.bf16.msra.mxu0 %v739
      %918 = vmatpush.bf16.msra.mxu0 %v738
      %919 = vmatpush.bf16.msra.mxu0 %v737
      %920 = vmatmul.bf16.gmra.mxu0 %v893
      %v921 = vpop.f32.mrf.mxu0
      %v922 = vadd.f32 0.0, %v921
      %v923 = vpop.f32.mrf.mxu0
      %924 = vdwg.mxu0
      %v925 = vadd.f32 %v911, %v922
      %v926 = vtanh.pop %v910
      %v927 = vpack.c.bf16 %v926, %v926
      %v928 = vtanh.pop %v925
      %v929 = vpack.c.bf16 %v928, %v928
      %930 = vst [vmem:[#allocation2 + $0x20] sm:$0xf] %v927
      %931 = vst [vmem:[#allocation2 + $0x24] sm:$0xf] %v929
      %v932 = vunpack.c.l.bf16 %v684
      %933 = vmatpush.bf16.msra.mxu0 %v744
      %934 = vmatpush.bf16.msra.mxu0 %v743
      %935 = vmatpush.bf16.msra.mxu0 %v742
      %936 = vmatpush.bf16.msra.mxu0 %v741
      %937 = vmatpush.bf16.msra.mxu0 %v740
      %938 = vmatpush.bf16.msra.mxu0 %v739
      %939 = vmatpush.bf16.msra.mxu0 %v738
      %940 = vmatpush.bf16.msra.mxu0 %v737
      %941 = vmatmul.bf16.gmra.mxu0 %v927
      %v942 = vpop.f32.mrf.mxu0
      %v943 = vadd.f32 0.0, %v942
      %v944 = vpop.f32.mrf.mxu0
      %945 = vdwg.mxu0
      %v946 = vadd.f32 %v932, %v943
      %v947 = vunpack.c.l.bf16 %v685
      %948 = vmatpush.bf16.msra.mxu0 %v744
      %949 = vmatpush.bf16.msra.mxu0 %v743
      %950 = vmatpush.bf16.msra.mxu0 %v742
      %951 = vmatpush.bf16.msra.mxu0 %v741
      %952 = vmatpush.bf16.msra.mxu0 %v740
      %953 = vmatpush.bf16.msra.mxu0 %v739
      %954 = vmatpush.bf16.msra.mxu0 %v738
      %955 = vmatpush.bf16.msra.mxu0 %v737
      %956 = vmatmul.bf16.gmra.mxu0 %v929
      %v957 = vpop.f32.mrf.mxu0
      %v958 = vadd.f32 0.0, %v957
      %v959 = vpop.f32.mrf.mxu0
      %960 = vdwg.mxu0
      %v961 = vadd.f32 %v947, %v958
      %v962 = vtanh.pop %v946
      %v963 = vpack.c.bf16 %v962, %v962
      %v964 = vtanh.pop %v961
      %v965 = vpack.c.bf16 %v964, %v964
      %966 = vst [vmem:[#allocation2 + $0x28] sm:$0xf] %v963
      %967 = vst [vmem:[#allocation2 + $0x2c] sm:$0xf] %v965
      %v968 = vunpack.c.l.bf16 %v686
      %969 = vmatpush.bf16.msra.mxu0 %v744
      %970 = vmatpush.bf16.msra.mxu0 %v743
      %971 = vmatpush.bf16.msra.mxu0 %v742
      %972 = vmatpush.bf16.msra.mxu0 %v741
      %973 = vmatpush.bf16.msra.mxu0 %v740
      %974 = vmatpush.bf16.msra.mxu0 %v739
      %975 = vmatpush.bf16.msra.mxu0 %v738
      %976 = vmatpush.bf16.msra.mxu0 %v737
      %977 = vmatmul.bf16.gmra.mxu0 %v963
      %v978 = vpop.f32.mrf.mxu0
      %v979 = vadd.f32 0.0, %v978
      %v980 = vpop.f32.mrf.mxu0
      %981 = vdwg.mxu0
      %v982 = vadd.f32 %v968, %v979
      %v983 = vunpack.c.l.bf16 %v687
      %984 = vmatpush.bf16.msra.mxu0 %v744
      %985 = vmatpush.bf16.msra.mxu0 %v743
      %986 = vmatpush.bf16.msra.mxu0 %v742
      %987 = vmatpush.bf16.msra.mxu0 %v741
      %988 = vmatpush.bf16.msra.mxu0 %v740
      %989 = vmatpush.bf16.msra.mxu0 %v739
      %990 = vmatpush.bf16.msra.mxu0 %v738
      %991 = vmatpush.bf16.msra.mxu0 %v737
      %992 = vmatmul.bf16.gmra.mxu0 %v965
      %v993 = vpop.f32.mrf.mxu0
      %v994 = vadd.f32 0.0, %v993
      %v995 = vpop.f32.mrf.mxu0
      %996 = vdwg.mxu0
      %v997 = vadd.f32 %v983, %v994
      %v998 = vtanh.pop %v982
      %v999 = vpack.c.bf16 %v998, %v998
      %v1000 = vtanh.pop %v997
      %v1001 = vpack.c.bf16 %v1000, %v1000
      %1002 = vst [vmem:[#allocation2 + $0x30] sm:$0xf] %v999
      %1003 = vst [vmem:[#allocation2 + $0x34] sm:$0xf] %v1001
      %v1004 = vld [vmem:[%s7] sm:$0xff]
      %v1005 = vld [vmem:[%s7 + $0x8] sm:$0xff]
      %v1006 = vld [vmem:[%s7 + $0x10] sm:$0xff]
      %v1007 = vld [vmem:[%s7 + $0x18] sm:$0xff]
      %v1008 = vld [vmem:[%s7 + $0x20] sm:$0xff]
      %v1009 = vld [vmem:[%s7 + $0x28] sm:$0xff]
      %v1010 = vld [vmem:[%s7 + $0x30] sm:$0xff]
      %v1011 = vld [vmem:[%s7 + $0x38] sm:$0xff]
      %v1012 = vld [vmem:[%s7 + $0x40] sm:$0xff]
      %v1013 = vld [vmem:[%s7 + $0x48] sm:$0xff]
      %v1014 = vld [vmem:[%s7 + $0x50] sm:$0xff]
      %v1015 = vld [vmem:[%s7 + $0x58] sm:$0xff]
      %v1016 = vld [vmem:[%s7 + $0x60] sm:$0xff]
      %v1017 = vld [vmem:[%s7 + $0x68] sm:$0xff]
      %v1018 = vld [vmem:[%s7 + $0x70] sm:$0xff]
      %v1019 = vld [vmem:[%s7 + $0x78] sm:$0xff]
      %v1020 = vld [vmem:[%s8] sm:$0x3]
      %v1021 = vld [vmem:[#allocation2] sm:$0xf]
      %v1022 = vld [vmem:[#allocation2 + $0x4] sm:$0xf]
      %v1023 = vld [vmem:[#allocation2 + $0x8] sm:$0xf]
      %v1024 = vld [vmem:[#allocation2 + $0xc] sm:$0xf]
      %v1025 = vld [vmem:[#allocation2 + $0x10] sm:$0xf]
      %v1026 = vld [vmem:[#allocation2 + $0x14] sm:$0xf]
      %v1027 = vld [vmem:[#allocation2 + $0x18] sm:$0xf]
      %v1028 = vld [vmem:[#allocation2 + $0x1c] sm:$0xf]
      %v1029 = vld [vmem:[#allocation2 + $0x20] sm:$0xf]
      %v1030 = vld [vmem:[#allocation2 + $0x24] sm:$0xf]
      %v1031 = vld [vmem:[#allocation2 + $0x28] sm:$0xf]
      %v1032 = vld [vmem:[#allocation2 + $0x2c] sm:$0xf]
      %v1033 = vld [vmem:[#allocation2 + $0x30] sm:$0xf]
      %v1034 = vld [vmem:[#allocation2 + $0x34] sm:$0xf]
      %v1036 = vperm.slane %v1020, 0
      %v1037 = vperm.slane %v1020, 1
      %v1054 = vunpack.c.l.b16 %v1021
      %v1055 = vunpack.c.l.b16 %v1022
      %v1056 = vunpack.c.l.b16 %v1023
      %v1057 = vunpack.c.l.b16 %v1024
      %v1058 = vunpack.c.l.b16 %v1025
      %v1059 = vunpack.c.l.b16 %v1026
      %v1060 = vunpack.c.l.b16 %v1027
      %v1061 = vunpack.c.l.b16 %v1028
      %v1062 = vunpack.c.l.b16 %v1029
      %v1063 = vunpack.c.l.b16 %v1030
      %v1064 = vunpack.c.l.b16 %v1031
      %v1065 = vunpack.c.l.b16 %v1032
      %v1066 = vunpack.c.l.b16 %v1033
      %v1067 = vunpack.c.l.b16 %v1034
      %v1068 = vpack.c.b16 %v1055, %v1054
      %v1069 = vpack.c.b16 %v1057, %v1056
      %v1070 = vpack.c.b16 %v1059, %v1058
      %v1071 = vpack.c.b16 %v1061, %v1060
      %v1072 = vpack.c.b16 %v1063, %v1062
      %v1073 = vpack.c.b16 %v1065, %v1064
      %v1074 = vpack.c.b16 %v1067, %v1066
      %v1098 = vunpack.c.l.b16 %v1004
      %v1099 = vunpack.c.h.b16 %v1004
      %v1100 = vunpack.c.l.b16 %v1005
      %v1101 = vunpack.c.h.b16 %v1005
      %v1102 = vunpack.c.l.b16 %v1006
      %v1103 = vunpack.c.h.b16 %v1006
      %v1104 = vunpack.c.l.b16 %v1007
      %v1105 = vunpack.c.h.b16 %v1007
      %v1106 = vunpack.c.l.b16 %v1008
      %v1107 = vunpack.c.h.b16 %v1008
      %v1108 = vunpack.c.l.b16 %v1009
      %v1109 = vunpack.c.h.b16 %v1009
      %v1110 = vunpack.c.l.b16 %v1010
      %v1111 = vunpack.c.h.b16 %v1010
      %v1112 = vunpack.c.l.b16 %v1011
      %v1113 = vunpack.c.h.b16 %v1011
      %v1114 = vunpack.c.l.b16 %v1012
      %v1115 = vunpack.c.h.b16 %v1012
      %v1116 = vunpack.c.l.b16 %v1013
      %v1117 = vunpack.c.h.b16 %v1013
      %v1118 = vunpack.c.l.b16 %v1014
      %v1119 = vunpack.c.h.b16 %v1014
      %v1120 = vunpack.c.l.b16 %v1015
      %v1121 = vunpack.c.h.b16 %v1015
      %v1122 = vunpack.c.l.b16 %v1016
      %v1123 = vunpack.c.h.b16 %v1016
      %v1124 = vunpack.c.l.b16 %v1017
      %v1125 = vunpack.c.h.b16 %v1017
      %v1126 = vunpack.c.l.b16 %v1018
      %v1127 = vunpack.c.h.b16 %v1018
      %v1128 = vunpack.c.l.b16 %v1019
      %v1129 = vunpack.c.h.b16 %v1019
      %v1130 = vpack.c.b16 %v1100, %v1098
      %v1131 = vpack.c.b16 %v1101, %v1099
      %v1132 = vpack.c.b16 %v1104, %v1102
      %v1133 = vpack.c.b16 %v1105, %v1103
      %v1134 = vpack.c.b16 %v1108, %v1106
      %v1135 = vpack.c.b16 %v1109, %v1107
      %v1136 = vpack.c.b16 %v1112, %v1110
      %v1137 = vpack.c.b16 %v1113, %v1111
      %v1138 = vpack.c.b16 %v1116, %v1114
      %v1139 = vpack.c.b16 %v1117, %v1115
      %v1140 = vpack.c.b16 %v1120, %v1118
      %v1141 = vpack.c.b16 %v1121, %v1119
      %v1142 = vpack.c.b16 %v1124, %v1122
      %v1143 = vpack.c.b16 %v1125, %v1123
      %v1144 = vpack.c.b16 %v1128, %v1126
      %v1145 = vpack.c.b16 %v1129, %v1127
      %1162 = vmatpush.bf16.msra.mxu0 %v1144
      %1163 = vmatpush.bf16.msra.mxu0 %v1142
      %1164 = vmatpush.bf16.msra.mxu0 %v1140
      %1165 = vmatpush.bf16.msra.mxu0 %v1138
      %1166 = vmatpush.bf16.msra.mxu0 %v1136
      %1167 = vmatpush.bf16.msra.mxu0 %v1134
      %1168 = vmatpush.bf16.msra.mxu0 %v1132
      %1169 = vmatpush.bf16.msra.mxu0 %v1130
      %1170 = vmatmul.bf16.gmra.mxu0 %v1068
      %v1171 = vpop.f32.mrf.mxu0
      %v1172 = vadd.f32 %v1036, %v1171
      %v1173 = vpop.f32.mrf.mxu0
      %v1174 = vadd.f32 %v1036, %v1173
      %1175 = vmatmul.bf16.gmra.mxu0 %v1069
      %v1176 = vpop.f32.mrf.mxu0
      %v1177 = vadd.f32 %v1036, %v1176
      %v1178 = vpop.f32.mrf.mxu0
      %v1179 = vadd.f32 %v1036, %v1178
      %1180 = vmatmul.bf16.gmra.mxu0 %v1070
      %v1181 = vpop.f32.mrf.mxu0
      %v1182 = vadd.f32 %v1036, %v1181
      %v1183 = vpop.f32.mrf.mxu0
      %v1184 = vadd.f32 %v1036, %v1183
      %1185 = vmatmul.bf16.gmra.mxu0 %v1071
      %v1186 = vpop.f32.mrf.mxu0
      %v1187 = vadd.f32 %v1036, %v1186
      %v1188 = vpop.f32.mrf.mxu0
      %v1189 = vadd.f32 %v1036, %v1188
      %1190 = vmatmul.bf16.gmra.mxu0 %v1072
      %v1191 = vpop.f32.mrf.mxu0
      %v1192 = vadd.f32 %v1036, %v1191
      %v1193 = vpop.f32.mrf.mxu0
      %v1194 = vadd.f32 %v1036, %v1193
      %1195 = vmatmul.bf16.gmra.mxu0 %v1073
      %v1196 = vpop.f32.mrf.mxu0
      %v1197 = vadd.f32 %v1036, %v1196
      %v1198 = vpop.f32.mrf.mxu0
      %v1199 = vadd.f32 %v1036, %v1198
      %1200 = vmatmul.bf16.gmra.mxu0 %v1074
      %v1201 = vpop.f32.mrf.mxu0
      %v1202 = vadd.f32 %v1036, %v1201
      %v1203 = vpop.f32.mrf.mxu0
      %v1204 = vadd.f32 %v1036, %v1203
      %1205 = vdwg.mxu0
      %1206 = vmatpush.bf16.msra.mxu0 %v1145
      %1207 = vmatpush.bf16.msra.mxu0 %v1143
      %1208 = vmatpush.bf16.msra.mxu0 %v1141
      %1209 = vmatpush.bf16.msra.mxu0 %v1139
      %1210 = vmatpush.bf16.msra.mxu0 %v1137
      %1211 = vmatpush.bf16.msra.mxu0 %v1135
      %1212 = vmatpush.bf16.msra.mxu0 %v1133
      %1213 = vmatpush.bf16.msra.mxu0 %v1131
      %1214 = vmatmul.bf16.gmra.mxu0 %v1068
      %v1215 = vpop.f32.mrf.mxu0
      %v1216 = vadd.f32 %v1037, %v1215
      %v1217 = vpop.f32.mrf.mxu0
      %v1218 = vadd.f32 %v1037, %v1217
      %1219 = vmatmul.bf16.gmra.mxu0 %v1069
      %v1220 = vpop.f32.mrf.mxu0
      %v1221 = vadd.f32 %v1037, %v1220
      %v1222 = vpop.f32.mrf.mxu0
      %v1223 = vadd.f32 %v1037, %v1222
      %1224 = vmatmul.bf16.gmra.mxu0 %v1070
      %v1225 = vpop.f32.mrf.mxu0
      %v1226 = vadd.f32 %v1037, %v1225
      %v1227 = vpop.f32.mrf.mxu0
      %v1228 = vadd.f32 %v1037, %v1227
      %1229 = vmatmul.bf16.gmra.mxu0 %v1071
      %v1230 = vpop.f32.mrf.mxu0
      %v1231 = vadd.f32 %v1037, %v1230
      %v1232 = vpop.f32.mrf.mxu0
      %v1233 = vadd.f32 %v1037, %v1232
      %1234 = vmatmul.bf16.gmra.mxu0 %v1072
      %v1235 = vpop.f32.mrf.mxu0
      %v1236 = vadd.f32 %v1037, %v1235
      %v1237 = vpop.f32.mrf.mxu0
      %v1238 = vadd.f32 %v1037, %v1237
      %1239 = vmatmul.bf16.gmra.mxu0 %v1073
      %v1240 = vpop.f32.mrf.mxu0
      %v1241 = vadd.f32 %v1037, %v1240
      %v1242 = vpop.f32.mrf.mxu0
      %v1243 = vadd.f32 %v1037, %v1242
      %1244 = vmatmul.bf16.gmra.mxu0 %v1074
      %v1245 = vpop.f32.mrf.mxu0
      %v1246 = vadd.f32 %v1037, %v1245
      %v1247 = vpop.f32.mrf.mxu0
      %v1248 = vadd.f32 %v1037, %v1247
      %1249 = vdwg.mxu0
      %v1250 = vmax.f32 %v1172, %v1216
      %1251 = vmax.xlane.f32.xlu0 %v1250
      %v1252 = vpop.xlane.xlu0 %1251
      %v1253 = vmax.f32 %v1174, %v1218
      %1254 = vmax.xlane.f32.xlu0 %v1253
      %v1255 = vpop.xlane.xlu0 %1254
      %v1256 = vmax.f32 %v1177, %v1221
      %1257 = vmax.xlane.f32.xlu0 %v1256
      %v1258 = vpop.xlane.xlu0 %1257
      %v1259 = vmax.f32 %v1179, %v1223
      %1260 = vmax.xlane.f32.xlu0 %v1259
      %v1261 = vpop.xlane.xlu0 %1260
      %v1262 = vmax.f32 %v1182, %v1226
      %1263 = vmax.xlane.f32.xlu0 %v1262
      %v1264 = vpop.xlane.xlu0 %1263
      %v1265 = vmax.f32 %v1184, %v1228
      %1266 = vmax.xlane.f32.xlu0 %v1265
      %v1267 = vpop.xlane.xlu0 %1266
      %v1268 = vmax.f32 %v1187, %v1231
      %1269 = vmax.xlane.f32.xlu0 %v1268
      %v1270 = vpop.xlane.xlu0 %1269
      %v1271 = vmax.f32 %v1189, %v1233
      %1272 = vmax.xlane.f32.xlu0 %v1271
      %v1273 = vpop.xlane.xlu0 %1272
      %v1274 = vmax.f32 %v1192, %v1236
      %1275 = vmax.xlane.f32.xlu0 %v1274
      %v1276 = vpop.xlane.xlu0 %1275
      %v1277 = vmax.f32 %v1194, %v1238
      %1278 = vmax.xlane.f32.xlu0 %v1277
      %v1279 = vpop.xlane.xlu0 %1278
      %v1280 = vmax.f32 %v1197, %v1241
      %1281 = vmax.xlane.f32.xlu0 %v1280
      %v1282 = vpop.xlane.xlu0 %1281
      %v1283 = vmax.f32 %v1199, %v1243
      %1284 = vmax.xlane.f32.xlu0 %v1283
      %v1285 = vpop.xlane.xlu0 %1284
      %v1286 = vmax.f32 %v1202, %v1246
      %1287 = vmax.xlane.f32.xlu0 %v1286
      %v1288 = vpop.xlane.xlu0 %1287
      %v1289 = vmax.f32 %v1204, %v1248
      %1290 = vmax.xlane.f32.xlu0 %v1289
      %v1291 = vpop.xlane.xlu0 %1290
      %v1292 = vsub.f32 %v1172, %v1252
      %v1293 = vsub.f32 %v1216, %v1252
      %v1294 = vsub.f32 %v1174, %v1255
      %v1295 = vsub.f32 %v1218, %v1255
      %v1296 = vsub.f32 %v1177, %v1258
      %v1297 = vsub.f32 %v1221, %v1258
      %v1298 = vsub.f32 %v1179, %v1261
      %v1299 = vsub.f32 %v1223, %v1261
      %v1300 = vsub.f32 %v1182, %v1264
      %v1301 = vsub.f32 %v1226, %v1264
      %v1302 = vsub.f32 %v1184, %v1267
      %v1303 = vsub.f32 %v1228, %v1267
      %v1304 = vsub.f32 %v1187, %v1270
      %v1305 = vsub.f32 %v1231, %v1270
      %v1306 = vsub.f32 %v1189, %v1273
      %v1307 = vsub.f32 %v1233, %v1273
      %v1308 = vsub.f32 %v1192, %v1276
      %v1309 = vsub.f32 %v1236, %v1276
      %v1310 = vsub.f32 %v1194, %v1279
      %v1311 = vsub.f32 %v1238, %v1279
      %v1312 = vsub.f32 %v1197, %v1282
      %v1313 = vsub.f32 %v1241, %v1282
      %v1314 = vsub.f32 %v1199, %v1285
      %v1315 = vsub.f32 %v1243, %v1285
      %v1316 = vsub.f32 %v1202, %v1288
      %v1317 = vsub.f32 %v1246, %v1288
      %v1318 = vsub.f32 %v1204, %v1291
      %v1319 = vsub.f32 %v1248, %v1291
      %v1320 = vmul.f32 %v1292, 1.442695
      %v1321 = vpow.pop %v1320
      %v1322 = vmul.f32 %v1293, 1.442695
      %v1323 = vpow.pop %v1322
      %v1324 = vmul.f32 %v1294, 1.442695
      %v1325 = vpow.pop %v1324
      %v1326 = vmul.f32 %v1295, 1.442695
      %v1327 = vpow.pop %v1326
      %v1328 = vmul.f32 %v1296, 1.442695
      %v1329 = vpow.pop %v1328
      %v1330 = vmul.f32 %v1297, 1.442695
      %v1331 = vpow.pop %v1330
      %v1332 = vmul.f32 %v1298, 1.442695
      %v1333 = vpow.pop %v1332
      %v1334 = vmul.f32 %v1299, 1.442695
      %v1335 = vpow.pop %v1334
      %v1336 = vmul.f32 %v1300, 1.442695
      %v1337 = vpow.pop %v1336
      %v1338 = vmul.f32 %v1301, 1.442695
      %v1339 = vpow.pop %v1338
      %v1340 = vmul.f32 %v1302, 1.442695
      %v1341 = vpow.pop %v1340
      %v1342 = vmul.f32 %v1303, 1.442695
      %v1343 = vpow.pop %v1342
      %v1344 = vmul.f32 %v1304, 1.442695
      %v1345 = vpow.pop %v1344
      %v1346 = vmul.f32 %v1305, 1.442695
      %v1347 = vpow.pop %v1346
      %v1348 = vmul.f32 %v1306, 1.442695
      %v1349 = vpow.pop %v1348
      %v1350 = vmul.f32 %v1307, 1.442695
      %v1351 = vpow.pop %v1350
      %v1352 = vmul.f32 %v1308, 1.442695
      %v1353 = vpow.pop %v1352
      %v1354 = vmul.f32 %v1309, 1.442695
      %v1355 = vpow.pop %v1354
      %v1356 = vmul.f32 %v1310, 1.442695
      %v1357 = vpow.pop %v1356
      %v1358 = vmul.f32 %v1311, 1.442695
      %v1359 = vpow.pop %v1358
      %v1360 = vmul.f32 %v1312, 1.442695
      %v1361 = vpow.pop %v1360
      %v1362 = vmul.f32 %v1313, 1.442695
      %v1363 = vpow.pop %v1362
      %v1364 = vmul.f32 %v1314, 1.442695
      %v1365 = vpow.pop %v1364
      %v1366 = vmul.f32 %v1315, 1.442695
      %v1367 = vpow.pop %v1366
      %v1368 = vmul.f32 %v1316, 1.442695
      %v1369 = vpow.pop %v1368
      %v1370 = vmul.f32 %v1317, 1.442695
      %v1371 = vpow.pop %v1370
      %v1372 = vmul.f32 %v1318, 1.442695
      %v1373 = vpow.pop %v1372
      %v1374 = vmul.f32 %v1319, 1.442695
      %v1375 = vpow.pop %v1374
      %v1376 = vadd.f32 %v1321, %v1323
      %1377 = vadd.xlane.f32.xlu0 %v1376
      %v1378 = vpop.xlane.xlu0 %1377
      %v1379 = vadd.f32 %v1325, %v1327
      %1380 = vadd.xlane.f32.xlu0 %v1379
      %v1381 = vpop.xlane.xlu0 %1380
      %v1382 = vadd.f32 %v1329, %v1331
      %1383 = vadd.xlane.f32.xlu0 %v1382
      %v1384 = vpop.xlane.xlu0 %1383
      %v1385 = vadd.f32 %v1333, %v1335
      %1386 = vadd.xlane.f32.xlu0 %v1385
      %v1387 = vpop.xlane.xlu0 %1386
      %v1388 = vadd.f32 %v1337, %v1339
      %1389 = vadd.xlane.f32.xlu0 %v1388
      %v1390 = vpop.xlane.xlu0 %1389
      %v1391 = vadd.f32 %v1341, %v1343
      %1392 = vadd.xlane.f32.xlu0 %v1391
      %v1393 = vpop.xlane.xlu0 %1392
      %v1394 = vadd.f32 %v1345, %v1347
      %1395 = vadd.xlane.f32.xlu0 %v1394
      %v1396 = vpop.xlane.xlu0 %1395
      %v1397 = vadd.f32 %v1349, %v1351
      %1398 = vadd.xlane.f32.xlu0 %v1397
      %v1399 = vpop.xlane.xlu0 %1398
      %v1400 = vadd.f32 %v1353, %v1355
      %1401 = vadd.xlane.f32.xlu0 %v1400
      %v1402 = vpop.xlane.xlu0 %1401
      %v1403 = vadd.f32 %v1357, %v1359
      %1404 = vadd.xlane.f32.xlu0 %v1403
      %v1405 = vpop.xlane.xlu0 %1404
      %v1406 = vadd.f32 %v1361, %v1363
      %1407 = vadd.xlane.f32.xlu0 %v1406
      %v1408 = vpop.xlane.xlu0 %1407
      %v1409 = vadd.f32 %v1365, %v1367
      %1410 = vadd.xlane.f32.xlu0 %v1409
      %v1411 = vpop.xlane.xlu0 %1410
      %v1412 = vadd.f32 %v1369, %v1371
      %1413 = vadd.xlane.f32.xlu0 %v1412
      %v1414 = vpop.xlane.xlu0 %1413
      %v1415 = vadd.f32 %v1373, %v1375
      %1416 = vadd.xlane.f32.xlu0 %v1415
      %v1417 = vpop.xlane.xlu0 %1416
      %v1418 = vlog2.pop %v1378
      %v1419 = vmul.f32 %v1418, 0.6931472
      %v1420 = vlog2.pop %v1381
      %v1421 = vmul.f32 %v1420, 0.6931472
      %v1422 = vlog2.pop %v1384
      %v1423 = vmul.f32 %v1422, 0.6931472
      %v1424 = vlog2.pop %v1387
      %v1425 = vmul.f32 %v1424, 0.6931472
      %v1426 = vlog2.pop %v1390
      %v1427 = vmul.f32 %v1426, 0.6931472
      %v1428 = vlog2.pop %v1393
      %v1429 = vmul.f32 %v1428, 0.6931472
      %v1430 = vlog2.pop %v1396
      %v1431 = vmul.f32 %v1430, 0.6931472
      %v1432 = vlog2.pop %v1399
      %v1433 = vmul.f32 %v1432, 0.6931472
      %v1434 = vlog2.pop %v1402
      %v1435 = vmul.f32 %v1434, 0.6931472
      %v1436 = vlog2.pop %v1405
      %v1437 = vmul.f32 %v1436, 0.6931472
      %v1438 = vlog2.pop %v1408
      %v1439 = vmul.f32 %v1438, 0.6931472
      %v1440 = vlog2.pop %v1411
      %v1441 = vmul.f32 %v1440, 0.6931472
      %v1442 = vlog2.pop %v1414
      %v1443 = vmul.f32 %v1442, 0.6931472
      %v1444 = vlog2.pop %v1417
      %v1445 = vmul.f32 %v1444, 0.6931472
      %v1446 = vadd.f32 %v1252, %v1419
      %v1447 = vadd.f32 %v1255, %v1421
      %v1448 = vadd.f32 %v1258, %v1423
      %v1449 = vadd.f32 %v1261, %v1425
      %v1450 = vadd.f32 %v1264, %v1427
      %v1451 = vadd.f32 %v1267, %v1429
      %v1452 = vadd.f32 %v1270, %v1431
      %v1453 = vadd.f32 %v1273, %v1433
      %v1454 = vadd.f32 %v1276, %v1435
      %v1455 = vadd.f32 %v1279, %v1437
      %v1456 = vadd.f32 %v1282, %v1439
      %v1457 = vadd.f32 %v1285, %v1441
      %v1458 = vadd.f32 %v1288, %v1443
      %v1459 = vadd.f32 %v1291, %v1445
      %v1460 = vlaneseq
      %v1461 = vand.u32 %v1460, 127
      %v1462 = vadd.s32 %v1461, 128
      %1463 = vset.pattern.permute.xlu0 0
      %1464 = vperm.xlu0 %1463, %v414
      %v1465 = vpop.permute.xlu0 %1464
      %1466 = vset.pattern.permute.xlu0 0
      %1467 = vperm.xlu0 %1466, %v415
      %v1468 = vpop.permute.xlu0 %1467
      %1469 = vset.pattern.permute.xlu0 0
      %1470 = vperm.xlu0 %1469, %v416
      %v1471 = vpop.permute.xlu0 %1470
      %1472 = vset.pattern.permute.xlu0 0
      %1473 = vperm.xlu0 %1472, %v417
      %v1474 = vpop.permute.xlu0 %1473
      %1475 = vset.pattern.permute.xlu0 0
      %1476 = vperm.xlu0 %1475, %v418
      %v1477 = vpop.permute.xlu0 %1476
      %1478 = vset.pattern.permute.xlu0 0
      %1479 = vperm.xlu0 %1478, %v419
      %v1480 = vpop.permute.xlu0 %1479
      %1481 = vset.pattern.permute.xlu0 0
      %1482 = vperm.xlu0 %1481, %v420
      %v1483 = vpop.permute.xlu0 %1482
      %1484 = vset.pattern.permute.xlu0 0
      %1485 = vperm.xlu0 %1484, %v421
      %v1486 = vpop.permute.xlu0 %1485
      %1487 = vset.pattern.permute.xlu0 0
      %1488 = vperm.xlu0 %1487, %v422
      %v1489 = vpop.permute.xlu0 %1488
      %1490 = vset.pattern.permute.xlu0 0
      %1491 = vperm.xlu0 %1490, %v423
      %v1492 = vpop.permute.xlu0 %1491
      %1493 = vset.pattern.permute.xlu0 0
      %1494 = vperm.xlu0 %1493, %v424
      %v1495 = vpop.permute.xlu0 %1494
      %1496 = vset.pattern.permute.xlu0 0
      %1497 = vperm.xlu0 %1496, %v425
      %v1498 = vpop.permute.xlu0 %1497
      %1499 = vset.pattern.permute.xlu0 0
      %1500 = vperm.xlu0 %1499, %v426
      %v1501 = vpop.permute.xlu0 %1500
      %1502 = vset.pattern.permute.xlu0 0
      %1503 = vperm.xlu0 %1502, %v427
      %v1504 = vpop.permute.xlu0 %1503
      %vm1505 = vcmp.eq.s32.totalorder %v1461, %v1465
      %vm1506 = vcmp.eq.s32.totalorder %v1462, %v1465
      %vm1507 = vcmp.eq.s32.totalorder %v1461, %v1468
      %vm1508 = vcmp.eq.s32.totalorder %v1462, %v1468
      %vm1509 = vcmp.eq.s32.totalorder %v1461, %v1471
      %vm1510 = vcmp.eq.s32.totalorder %v1462, %v1471
      %vm1511 = vcmp.eq.s32.totalorder %v1461, %v1474
      %vm1512 = vcmp.eq.s32.totalorder %v1462, %v1474
      %vm1513 = vcmp.eq.s32.totalorder %v1461, %v1477
      %vm1514 = vcmp.eq.s32.totalorder %v1462, %v1477
      %vm1515 = vcmp.eq.s32.totalorder %v1461, %v1480
      %vm1516 = vcmp.eq.s32.totalorder %v1462, %v1480
      %vm1517 = vcmp.eq.s32.totalorder %v1461, %v1483
      %vm1518 = vcmp.eq.s32.totalorder %v1462, %v1483
      %vm1519 = vcmp.eq.s32.totalorder %v1461, %v1486
      %vm1520 = vcmp.eq.s32.totalorder %v1462, %v1486
      %vm1521 = vcmp.eq.s32.totalorder %v1461, %v1489
      %vm1522 = vcmp.eq.s32.totalorder %v1462, %v1489
      %vm1523 = vcmp.eq.s32.totalorder %v1461, %v1492
      %vm1524 = vcmp.eq.s32.totalorder %v1462, %v1492
      %vm1525 = vcmp.eq.s32.totalorder %v1461, %v1495
      %vm1526 = vcmp.eq.s32.totalorder %v1462, %v1495
      %vm1527 = vcmp.eq.s32.totalorder %v1461, %v1498
      %vm1528 = vcmp.eq.s32.totalorder %v1462, %v1498
      %vm1529 = vcmp.eq.s32.totalorder %v1461, %v1501
      %vm1530 = vcmp.eq.s32.totalorder %v1462, %v1501
      %vm1531 = vcmp.eq.s32.totalorder %v1461, %v1504
      %vm1532 = vcmp.eq.s32.totalorder %v1462, %v1504
      %v1533 = vsel %vm1505, %v1172, 0.0
      %v1534 = vsel %vm1506, %v1216, 0.0
      %v1535 = vsel %vm1507, %v1174, 0.0
      %v1536 = vsel %vm1508, %v1218, 0.0
      %v1537 = vsel %vm1509, %v1177, 0.0
      %v1538 = vsel %vm1510, %v1221, 0.0
      %v1539 = vsel %vm1511, %v1179, 0.0
      %v1540 = vsel %vm1512, %v1223, 0.0
      %v1541 = vsel %vm1513, %v1182, 0.0
      %v1542 = vsel %vm1514, %v1226, 0.0
      %v1543 = vsel %vm1515, %v1184, 0.0
      %v1544 = vsel %vm1516, %v1228, 0.0
      %v1545 = vsel %vm1517, %v1187, 0.0
      %v1546 = vsel %vm1518, %v1231, 0.0
      %v1547 = vsel %vm1519, %v1189, 0.0
      %v1548 = vsel %vm1520, %v1233, 0.0
      %v1549 = vsel %vm1521, %v1192, 0.0
      %v1550 = vsel %vm1522, %v1236, 0.0
      %v1551 = vsel %vm1523, %v1194, 0.0
      %v1552 = vsel %vm1524, %v1238, 0.0
      %v1553 = vsel %vm1525, %v1197, 0.0
      %v1554 = vsel %vm1526, %v1241, 0.0
      %v1555 = vsel %vm1527, %v1199, 0.0
      %v1556 = vsel %vm1528, %v1243, 0.0
      %v1557 = vsel %vm1529, %v1202, 0.0
      %v1558 = vsel %vm1530, %v1246, 0.0
      %v1559 = vsel %vm1531, %v1204, 0.0
      %v1560 = vsel %vm1532, %v1248, 0.0
      %v1561 = vadd.f32 %v1533, %v1534
      %1562 = vadd.xlane.f32.xlu0 %v1561
      %v1563 = vpop.xlane.xlu0 %1562
      %v1564 = vadd.f32 %v1535, %v1536
      %1565 = vadd.xlane.f32.xlu0 %v1564
      %v1566 = vpop.xlane.xlu0 %1565
      %v1567 = vadd.f32 %v1537, %v1538
      %1568 = vadd.xlane.f32.xlu0 %v1567
      %v1569 = vpop.xlane.xlu0 %1568
      %v1570 = vadd.f32 %v1539, %v1540
      %1571 = vadd.xlane.f32.xlu0 %v1570
      %v1572 = vpop.xlane.xlu0 %1571
      %v1573 = vadd.f32 %v1541, %v1542
      %1574 = vadd.xlane.f32.xlu0 %v1573
      %v1575 = vpop.xlane.xlu0 %1574
      %v1576 = vadd.f32 %v1543, %v1544
      %1577 = vadd.xlane.f32.xlu0 %v1576
      %v1578 = vpop.xlane.xlu0 %1577
      %v1579 = vadd.f32 %v1545, %v1546
      %1580 = vadd.xlane.f32.xlu0 %v1579
      %v1581 = vpop.xlane.xlu0 %1580
      %v1582 = vadd.f32 %v1547, %v1548
      %1583 = vadd.xlane.f32.xlu0 %v1582
      %v1584 = vpop.xlane.xlu0 %1583
      %v1585 = vadd.f32 %v1549, %v1550
      %1586 = vadd.xlane.f32.xlu0 %v1585
      %v1587 = vpop.xlane.xlu0 %1586
      %v1588 = vadd.f32 %v1551, %v1552
      %1589 = vadd.xlane.f32.xlu0 %v1588
      %v1590 = vpop.xlane.xlu0 %1589
      %v1591 = vadd.f32 %v1553, %v1554
      %1592 = vadd.xlane.f32.xlu0 %v1591
      %v1593 = vpop.xlane.xlu0 %1592
      %v1594 = vadd.f32 %v1555, %v1556
      %1595 = vadd.xlane.f32.xlu0 %v1594
      %v1596 = vpop.xlane.xlu0 %1595
      %v1597 = vadd.f32 %v1557, %v1558
      %1598 = vadd.xlane.f32.xlu0 %v1597
      %v1599 = vpop.xlane.xlu0 %1598
      %v1600 = vadd.f32 %v1559, %v1560
      %1601 = vadd.xlane.f32.xlu0 %v1600
      %v1602 = vpop.xlane.xlu0 %1601
      %v1603 = vsub.f32 %v1446, %v1563
      %v1604 = vsub.f32 %v1447, %v1566
      %v1605 = vsub.f32 %v1448, %v1569
      %v1606 = vsub.f32 %v1449, %v1572
      %v1607 = vsub.f32 %v1450, %v1575
      %v1608 = vsub.f32 %v1451, %v1578
      %v1609 = vsub.f32 %v1452, %v1581
      %v1610 = vsub.f32 %v1453, %v1584
      %v1611 = vsub.f32 %v1454, %v1587
      %v1612 = vsub.f32 %v1455, %v1590
      %v1613 = vsub.f32 %v1456, %v1593
      %v1614 = vsub.f32 %v1457, %v1596
      %v1615 = vsub.f32 %v1458, %v1599
      %v1616 = vsub.f32 %v1459, %v1602
      %vm1617 = vcmask 7168
      %v1618 = vsel %vm1617, %v1603, 0.0
      %v1619 = vsel %vm1617, %v1604, 0.0
      %v1620 = vadd.f32 %v1618, %v1619
      %v1621 = vsel %vm1617, %v1605, 0.0
      %v1622 = vadd.f32 %v1620, %v1621
      %v1623 = vsel %vm1617, %v1606, 0.0
      %v1624 = vadd.f32 %v1622, %v1623
      %v1625 = vsel %vm1617, %v1607, 0.0
      %v1626 = vadd.f32 %v1624, %v1625
      %v1627 = vsel %vm1617, %v1608, 0.0
      %v1628 = vadd.f32 %v1626, %v1627
      %v1629 = vsel %vm1617, %v1609, 0.0
      %v1630 = vadd.f32 %v1628, %v1629
      %v1631 = vsel %vm1617, %v1610, 0.0
      %v1632 = vadd.f32 %v1630, %v1631
      %v1633 = vsel %vm1617, %v1611, 0.0
      %v1634 = vadd.f32 %v1632, %v1633
      %v1635 = vsel %vm1617, %v1612, 0.0
      %v1636 = vadd.f32 %v1634, %v1635
      %v1637 = vsel %vm1617, %v1613, 0.0
      %v1638 = vadd.f32 %v1636, %v1637
      %v1639 = vsel %vm1617, %v1614, 0.0
      %v1640 = vadd.f32 %v1638, %v1639
      %v1641 = vsel %vm1617, %v1615, 0.0
      %v1642 = vadd.f32 %v1640, %v1641
      %v1643 = vsel %vm1617, %v1616, 0.0
      %v1644 = vadd.f32 %v1642, %v1643
      %1645 = vadd.xlane.f32.xlu0 %v1644
      %v1646 = vpop.xlane.xlu0 %1645
      %v1647 = vrot.slane %v1646, 4
      %v1648 = vadd.f32 %v1646, %v1647
      %v1649 = vrot.slane %v1648, 2
      %v1650 = vadd.f32 %v1648, %v1649
      %v1651 = vrot.slane %v1650, 1
      %v1652 = vadd.f32 %v1650, %v1651
      %s1653 = vtos %v1652
      %s1654 = sadd.f32 %s1653, 0.0
      %v1655 = vstv %s1654
      %1656 = vst [vmem:[%s399] sm:$0xff] %v1655
      %p1657 = scmp.lt.s32.totalorder %s21, 1
      %s1658 = scalar_select %p1657, %s21, 1
      %s1659 = smul.addr %s1658, 8
      %s1660 = scalar_lea.vmem %s10, %s1659
      // Predicated region
      $region61: #{captioning_rnn_forward.1} parent=59 // pred_check
        %p1661 = pneg %p264
      $region62: #{captioning_rnn_forward.1} parent=59 // pred_check_branch
        %1663 = sbr.rel (%p1661) target = $region64
      $region63: #{captioning_rnn_forward.1} parent=59 // pred_region
        _
      $region64: #{captioning_rnn_forward.1} parent=59 // pred_fallthru
        _
    $region60: #{captioning_rnn_forward.1} parent=5 // pred_fallthru
      _
    %p1664 = scmp.le.s32.totalorder 2, %s16
    // Predicated region
    $region65: #{captioning_rnn_forward.1} parent=5 // pred_check
      %p1665 = pneg %p1664
    $region66: #{captioning_rnn_forward.1} parent=5 // pred_check_branch
      %1667 = sbr.rel (%p1665) target = $region68
    $region67: #{captioning_rnn_forward.1} parent=5 // pred_region
      %s1668 = ssub.s32 %s16, 2
      // Predicated region
      $region69: #{captioning_rnn_forward.1} parent=67 // pred_check
        %p1669 = pneg %p270
      $region70: #{captioning_rnn_forward.1} parent=67 // pred_check_branch
        %1671 = sbr.rel (%p1669) target = $region72
      $region71: #{captioning_rnn_forward.1} parent=67 // pred_region
        %p1672 = scmp.lt.s32.totalorder %s22, 1
        %s1673 = scalar_select %p1672, %s22, 1
        %s1674 = smul.addr %s1673, 8
        %s1675 = scalar_lea.vmem %s10, %s1674
      $region72: #{captioning_rnn_forward.1} parent=67 // pred_fallthru
        _
    $region68: #{captioning_rnn_forward.1} parent=5 // pred_fallthru
      _
  $region6: #{captioning_rnn_forward.1} parent=0 // loop_footer
    %s20 = sadd.s32 1, %s16
  $region7: #{captioning_rnn_forward.1} parent=0 // loop_footer_branch
    %15 = sbr.rel target = $region3
  $region8: #{captioning_rnn_forward.1} parent=0 // loop_exit
    _

</llo_original>
